<compile_context>
chip_gen: v7x
topology: tpu7x:2x2x1
jax: 0.10.0
libtpu: 0.0.40
codegen_flags: <defaults>
</compile_context>

<pallas_src>
import functools

import jax
import jax.numpy as jnp
from jax import lax
from jax.experimental import pallas as pl
from jax.experimental.pallas import tpu as pltpu


def _fc_row_start(V):
    # w_fc rows start at the first multiple of 8 past the gate table + 2 bias rows.
    return ((V + 2 + 7) // 8) * 8


# ----------------------------- fused kernel ----------------------------------

def fused_lstm_kernel(ids_ref, wb_ref, fp_ref, out_ref):
    """Gather -> LSTM1 -> (BN folded) LSTM2 -> Linear -> softmax, all in VMEM.

    ids_ref : (B, T) int32, SMEM   token ids
    wb_ref  : (H, 12H) bf16, VMEM  [ w_hh1 | w_ih2_bnfolded | w_hh2 ] along lanes
    fp_ref  : (R0+H, 4H) f32, VMEM rows 0:V      gate table (emb @ W_ih1 + b1)
                                   row  V        b2 (BN shift folded in)
                                   row  V+1      b_fc (lanes 0:V)
                                   rows R0:R0+H  w_fc (lanes 0:V)
    out_ref : (B, V) f32           softmax probabilities
    """
    B, T = ids_ref.shape
    H = wb_ref.shape[0]
    G = 4 * H
    V = out_ref.shape[1]
    R0 = _fc_row_start(V)
    bf16 = jnp.bfloat16

    # ---- one-time loads (off the recurrence critical path) -------------------
    w1cat = wb_ref[:, 0:2 * G]          # (H, 2G) = [w_hh1 | w_ih2f]   bf16
    w2cat = wb_ref[:, G:3 * G]          # (H, 2G) = [w_ih2f | w_hh2]   bf16
    w_hh2 = wb_ref[:, 2 * G:3 * G]      # (H, G)                       bf16
    b2 = fp_ref[V:V + 1, :]             # (1, G)  f32

    # Lane-dense activation constants: sigmoid(x) = 0.5*tanh(x/2)+0.5 on the
    # i/f/o lane groups, plain tanh on the g group -> ONE tanh pass per cell.
    half = jnp.full((1, H), 0.5, jnp.float32)
    one = jnp.ones((1, H), jnp.float32)
    zero = jnp.zeros((1, H), jnp.float32)
    pre = jnp.concatenate([half, half, one, half], axis=1)       # (1, G)
    post_b = jnp.concatenate([half, half, zero, half], axis=1)   # (1, G)

    def cell(gates, c):
        th = jnp.tanh(gates * pre)        # single full-width EUP pass
        a = th * pre + post_b             # i,f,o -> sigmoid ; g -> tanh
        i = a[:, 0 * H:1 * H]
        f = a[:, 1 * H:2 * H]
        g = a[:, 2 * H:3 * H]
        o = a[:, 3 * H:4 * H]
        c_new = f * c + i * g
        h_new = o * jnp.tanh(c_new)
        return h_new, c_new

    def gather_xg(t):
        # Row-gather of the precomputed LSTM1 input-gate table (b1 folded in).
        rows = [fp_ref[pl.ds(ids_ref[b, t], 1), :] for b in range(B)]
        return jnp.concatenate(rows, axis=0)          # (B, G)

    # ---- LSTM1 (fully unrolled).  One bf16 h_{t-1} @ (H, 2G) dot per step
    # yields both the step-t recurrent gates and LSTM2's input projection
    # of h_{t-1} (i.e. g2[t-1]); only the w_hh1 half sits on the critical path.
    h = jnp.zeros((B, H), jnp.float32)
    c = jnp.zeros_like(h)
    g2 = [None] * T

    h, c = cell(gather_xg(0), c)                      # step 0: h_{-1} == 0
    for t in range(1, T):
        fused = jnp.dot(h.astype(bf16), w1cat, preferred_element_type=jnp.float32)
        g2[t - 1] = fused[:, G:2 * G] + b2            # LSTM2 input gates @ time t-1
        h, c = cell(gather_xg(t) + fused[:, 0:G], c)

    # Bridge dot: h == LSTM1's final hidden == LSTM2's initial hidden state.
    bridge = jnp.dot(h.astype(bf16), w2cat, preferred_element_type=jnp.float32)
    g2[T - 1] = bridge[:, 0:G] + b2                   # last LSTM2 input projection

    # ---- LSTM2 (carries (h, c) straight from LSTM1's final state).
    h, c = cell(g2[0] + bridge[:, G:2 * G], c)        # step 0 reuses the bridge dot
    for t in range(1, T):
        rec = jnp.dot(h.astype(bf16), w_hh2, preferred_element_type=jnp.float32)
        h, c = cell(g2[t] + rec, c)

    # ---- fc + EXACT softmax epilogue (tiny, far off any bottleneck).
    w_fc = fp_ref[R0:R0 + H, 0:V]                     # (H, V) f32
    b_fc = fp_ref[V + 1:V + 2, 0:V]                   # (1, V) f32
    logits = jnp.dot(h, w_fc, preferred_element_type=jnp.float32) + b_fc
    m = jnp.max(logits, axis=-1, keepdims=True)
    e = jnp.exp(logits - m)
    out_ref[...] = e / jnp.sum(e, axis=-1, keepdims=True)


# ----------------------------- host-side folding ------------------------------

def fold_params(p):
    """One-time folding & packing.

    * LSTM1 input projection precomputed as a (V, 4H) gate table (b1 folded in).
    * Eval-mode BatchNorm folded into LSTM2's input weights / bias.
    * All recurrent matmul weights packed into one bf16 buffer, everything else
      into one f32 buffer -> two weight DMAs total.
    """
    H = p["w_hh1"].shape[0]
    V = p["emb"].shape[0]
    G = 4 * H
    assert V <= G, "vocab rows must fit within the 4H lane width of the f32 pack"

    gate_table1 = p["emb"] @ p["w_ih1"] + p["b1"]                    # (V, 4H)
    # BN (eval): x_bn = y*scale + shift  =>  x_bn @ W = y @ (scale[:,None]*W) + shift @ W
    w_ih2f = p["bn_scale"].reshape(-1, 1) * p["w_ih2"]               # (H, 4H)
    b2f = p["b2"] + p["bn_shift"] @ p["w_ih2"]                       # (1, 4H)

    wb = jnp.concatenate([p["w_hh1"], w_ih2f, p["w_hh2"]],
                         axis=1).astype(jnp.bfloat16)                # (H, 12H)

    R0 = _fc_row_start(V)
    fp = jnp.zeros((R0 + H, G), jnp.float32)
    fp = fp.at[0:V, :].set(gate_table1)
    fp = fp.at[V, :].set(b2f.reshape(-1))
    fp = fp.at[V + 1, 0:V].set(p["b_fc"].reshape(-1))
    fp = fp.at[R0:R0 + H, 0:V].set(p["w_fc"])
    return dict(wb=wb, fp=fp)


# ----------------------------- wrapper ----------------------------------------

@functools.partial(jax.jit, static_argnames=("num_classes",))
def my_model_next_act(ac_input, wb, fp, *, num_classes):
    """Forward pass for task_name='next_act': one fused Pallas kernel, no grid."""
    B = ac_input.shape[0]
    return pl.pallas_call(
        fused_lstm_kernel,
        out_shape=jax.ShapeDtypeStruct((B, num_classes), jnp.float32),
        in_specs=[
            pl.BlockSpec(memory_space=pltpu.MemorySpace.SMEM),   # token ids
            pl.BlockSpec(memory_space=pltpu.MemorySpace.VMEM),   # bf16 weight pack
            pl.BlockSpec(memory_space=pltpu.MemorySpace.VMEM),   # f32 pack
        ],
        out_specs=pl.BlockSpec(memory_space=pltpu.MemorySpace.VMEM),
    )(ac_input.astype(jnp.int32), wb, fp)


# ----------------------------- reference (pure JAX, f32, unfolded) ------------

def _ref_lstm(x_bte, w_ih, w_hh, b, h0, c0):
    H = h0.shape[-1]

    def step(carry, x_t):
        h, c = carry
        gates = x_t @ w_ih + h @ w_hh + b
        i = jax.nn.sigmoid(gates[:, 0 * H:1 * H])
        f = jax.nn.sigmoid(gates[:, 1 * H:2 * H])
        g = jnp.tanh(gates[:, 2 * H:3 * H])
        o = jax.nn.sigmoid(gates[:, 3 * H:4 * H])
        c = f * c + i * g
        h = o * jnp.tanh(c)
        return (h, c), h

    (h_fin, c_fin), ys = lax.scan(step, (h0, c0), jnp.transpose(x_bte, (1, 0, 2)))
    return jnp.transpose(ys, (1, 0, 2)), h_fin, c_fin


def my_model_next_act_ref(ac_input, params):
    x = params["emb"][ac_input]
    B = x.shape[0]
    H = params["w_hh1"].shape[0]
    h0 = jnp.zeros((B, H), jnp.float32)
    y, h1, c1 = _ref_lstm(x, params["w_ih1"], params["w_hh1"], params["b1"], h0, h0)
    y_bn = y * params["bn_scale"][None] + params["bn_shift"][None]
    _, h_last, _ = _ref_lstm(y_bn, params["w_ih2"], params["w_hh2"], params["b2"], h1, c1)
    logits = h_last @ params["w_fc"] + params["b_fc"]
    return jax.nn.softmax(logits, axis=-1)


# ----------------------------- main -------------------------------------------

if __name__ == "__main__":
    B, T = 2, 8          # batch, sequence length
    V, E = 12, 8         # vocab size (ac_weights.shape[0]), act_dim (embedding dim)
    H = 32               # lstm_size
    eps = 1e-5

    key = jax.random.PRNGKey(0)
    ks = jax.random.split(key, 16)

    def init(k, shape, scale=0.1):
        return (scale * jax.random.normal(k, shape)).astype(jnp.float32)

    # Embedding (frozen ac_weights in the PyTorch module).
    emb = init(ks[0], (V, E), 0.5)

    # LSTM1: PyTorch weight_ih (4H, E), weight_hh (4H, H); stored transposed here.
    w_ih1 = init(ks[1], (E, 4 * H))
    w_hh1 = init(ks[2], (H, 4 * H))
    b1 = (init(ks[3], (4 * H,)) + init(ks[4], (4 * H,))).reshape(1, 4 * H)  # b_ih + b_hh

    # BatchNorm1d(H), eval mode with deterministic gamma/beta/running stats.
    gamma = 1.0 + init(ks[5], (H,))
    beta = init(ks[6], (H,))
    running_mean = init(ks[7], (H,))
    running_var = 0.5 + jnp.abs(init(ks[8], (H,)))
    bn_scale = (gamma / jnp.sqrt(running_var + eps)).reshape(1, H)
    bn_shift = (beta - running_mean.reshape(-1) * bn_scale.reshape(-1)).reshape(1, H)

    # LSTM2: input_size = hidden_size = H.
    w_ih2 = init(ks[9], (H, 4 * H))
    w_hh2 = init(ks[10], (H, 4 * H))
    b2 = (init(ks[11], (4 * H,)) + init(ks[12], (4 * H,))).reshape(1, 4 * H)

    # fc_act: Linear(H, V). PyTorch weight is (V, H); stored transposed here.
    w_fc = init(ks[13], (H, V))
    b_fc = init(ks[14], (V,)).reshape(1, V)

    params = dict(emb=emb, w_ih1=w_ih1, w_hh1=w_hh1, b1=b1,
                  bn_scale=bn_scale, bn_shift=bn_shift,
                  w_ih2=w_ih2, w_hh2=w_hh2, b2=b2, w_fc=w_fc, b_fc=b_fc)
    fused = fold_params(params)

    ac_input = jax.random.randint(ks[15], (B, T), 0, V)

    out = jax.block_until_ready(
        my_model_next_act(ac_input, fused["wb"], fused["fp"], num_classes=V))
    ref = jax.block_until_ready(my_model_next_act_ref(ac_input, params))

    assert out.shape == (B, V)
    # Exact softmax division -> rows sum to 1 to f32 precision.
    assert jnp.allclose(jnp.sum(out, axis=-1), 1.0, atol=1e-5)
    # bf16 recurrent matmuls vs. f32 pure-JAX reference.
    assert jnp.allclose(out, ref, rtol=1e-2, atol=1e-3), "mismatch vs pure-JAX reference"

    print("KERNEL_OK")
</pallas_src>

<mosaic_0001>
module attributes {stable_mosaic.version = 11 : i64} {
  func.func @fused_lstm_kernel(%arg0: memref<2x8xi32, #tpu.memory_space<smem>>, %arg1: memref<32x384xbf16, #tpu.memory_space<vmem>>, %arg2: memref<48x128xf32, #tpu.memory_space<vmem>>, %arg3: memref<2x12xf32, #tpu.memory_space<vmem>>) attributes {dimension_semantics = [], scalar_prefetch = 0 : i64, scratch_operands = 0 : i64, tpu.core_type = #tpu.core_type<tc>} {
    %c0 = arith.constant 0 : index
    %c0_0 = arith.constant 0 : index
    %0 = vector.load %arg1[%c0, %c0_0] : memref<32x384xbf16, #tpu.memory_space<vmem>>, vector<32x256xbf16>
    %c0_1 = arith.constant 0 : index
    %c128 = arith.constant 128 : index
    %1 = vector.load %arg1[%c0_1, %c128] : memref<32x384xbf16, #tpu.memory_space<vmem>>, vector<32x256xbf16>
    %c0_2 = arith.constant 0 : index
    %c256 = arith.constant 256 : index
    %2 = vector.load %arg1[%c0_2, %c256] : memref<32x384xbf16, #tpu.memory_space<vmem>>, vector<32x128xbf16>
    %c12 = arith.constant 12 : index
    %c0_3 = arith.constant 0 : index
    %3 = vector.load %arg2[%c12, %c0_3] : memref<48x128xf32, #tpu.memory_space<vmem>>, vector<1x128xf32>
    %cst = arith.constant 5.000000e-01 : f32
    %4 = vector.broadcast %cst : f32 to vector<1x32xf32>
    %cst_4 = arith.constant 1.000000e+00 : f32
    %5 = vector.broadcast %cst_4 : f32 to vector<1x32xf32>
    %cst_5 = arith.constant 0.000000e+00 : f32
    %6 = vector.broadcast %cst_5 : f32 to vector<1x32xf32>
    %7 = tpu.concatenate %4, %4, %5, %4 in 1 : vector<1x32xf32>, vector<1x32xf32>, vector<1x32xf32>, vector<1x32xf32> -> vector<1x128xf32>
    %8 = tpu.concatenate %4, %4, %6, %4 in 1 : vector<1x32xf32>, vector<1x32xf32>, vector<1x32xf32>, vector<1x32xf32> -> vector<1x128xf32>
    %cst_6 = arith.constant 0.000000e+00 : f32
    %9 = vector.broadcast %cst_6 : f32 to vector<2x32xf32>
    %c0_7 = arith.constant 0 : index
    %c0_8 = arith.constant 0 : index
    %10 = memref.load %arg0[%c0_7, %c0_8] : memref<2x8xi32, #tpu.memory_space<smem>>
    %11 = arith.index_cast %10 : i32 to index
    %c0_9 = arith.constant 0 : index
    %12 = vector.load %arg2[%11, %c0_9] : memref<48x128xf32, #tpu.memory_space<vmem>>, vector<1x128xf32>
    %c1 = arith.constant 1 : index
    %c0_10 = arith.constant 0 : index
    %13 = memref.load %arg0[%c1, %c0_10] : memref<2x8xi32, #tpu.memory_space<smem>>
    %14 = arith.index_cast %13 : i32 to index
    %c0_11 = arith.constant 0 : index
    %15 = vector.load %arg2[%14, %c0_11] : memref<48x128xf32, #tpu.memory_space<vmem>>, vector<1x128xf32>
    %16 = tpu.concatenate %12, %15 in 0 : vector<1x128xf32>, vector<1x128xf32> -> vector<2x128xf32>
    %17 = vector.broadcast %7 : vector<1x128xf32> to vector<2x128xf32>
    %18 = arith.mulf %16, %17 : vector<2x128xf32>
    %19 = math.tanh %18 : vector<2x128xf32>
    %20 = vector.broadcast %7 : vector<1x128xf32> to vector<2x128xf32>
    %21 = arith.mulf %19, %20 : vector<2x128xf32>
    %22 = vector.broadcast %8 : vector<1x128xf32> to vector<2x128xf32>
    %23 = arith.addf %21, %22 : vector<2x128xf32>
    %24 = vector.extract_strided_slice %23 {offsets = [0, 0], sizes = [2, 32], strides = [1, 1]} : vector<2x128xf32> to vector<2x32xf32>
    %25 = vector.extract_strided_slice %23 {offsets = [0, 32], sizes = [2, 32], strides = [1, 1]} : vector<2x128xf32> to vector<2x32xf32>
    %26 = vector.extract_strided_slice %23 {offsets = [0, 64], sizes = [2, 32], strides = [1, 1]} : vector<2x128xf32> to vector<2x32xf32>
    %27 = vector.extract_strided_slice %23 {offsets = [0, 96], sizes = [2, 32], strides = [1, 1]} : vector<2x128xf32> to vector<2x32xf32>
    %28 = arith.mulf %25, %9 : vector<2x32xf32>
    %29 = arith.mulf %24, %26 : vector<2x32xf32>
    %30 = arith.addf %28, %29 : vector<2x32xf32>
    %31 = math.tanh %30 : vector<2x32xf32>
    %32 = arith.mulf %27, %31 : vector<2x32xf32>
    %33 = arith.truncf %32 : vector<2x32xf32> to vector<2x32xbf16>
    %cst_12 = arith.constant dense<0.000000e+00> : vector<2x256xf32>
    %34 = tpu.matmul %33, %0, %cst_12 {dimension_numbers = #tpu.dot_dimension_numbers<[1], [0], [0], [1], [0, 0, 1, 1], [], []>} : vector<2x32xbf16>, vector<32x256xbf16>, vector<2x256xf32> -> vector<2x256xf32>
    %35 = vector.extract_strided_slice %34 {offsets = [0, 128], sizes = [2, 128], strides = [1, 1]} : vector<2x256xf32> to vector<2x128xf32>
    %36 = vector.broadcast %3 : vector<1x128xf32> to vector<2x128xf32>
    %37 = arith.addf %35, %36 : vector<2x128xf32>
    %c0_13 = arith.constant 0 : index
    %c1_14 = arith.constant 1 : index
    %38 = memref.load %arg0[%c0_13, %c1_14] : memref<2x8xi32, #tpu.memory_space<smem>>
    %39 = arith.index_cast %38 : i32 to index
    %c0_15 = arith.constant 0 : index
    %40 = vector.load %arg2[%39, %c0_15] : memref<48x128xf32, #tpu.memory_space<vmem>>, vector<1x128xf32>
    %c1_16 = arith.constant 1 : index
    %c1_17 = arith.constant 1 : index
    %41 = memref.load %arg0[%c1_16, %c1_17] : memref<2x8xi32, #tpu.memory_space<smem>>
    %42 = arith.index_cast %41 : i32 to index
    %c0_18 = arith.constant 0 : index
    %43 = vector.load %arg2[%42, %c0_18] : memref<48x128xf32, #tpu.memory_space<vmem>>, vector<1x128xf32>
    %44 = tpu.concatenate %40, %43 in 0 : vector<1x128xf32>, vector<1x128xf32> -> vector<2x128xf32>
    %45 = vector.extract_strided_slice %34 {offsets = [0, 0], sizes = [2, 128], strides = [1, 1]} : vector<2x256xf32> to vector<2x128xf32>
    %46 = arith.addf %44, %45 : vector<2x128xf32>
    %47 = vector.broadcast %7 : vector<1x128xf32> to vector<2x128xf32>
    %48 = arith.mulf %46, %47 : vector<2x128xf32>
    %49 = math.tanh %48 : vector<2x128xf32>
    %50 = vector.broadcast %7 : vector<1x128xf32> to vector<2x128xf32>
    %51 = arith.mulf %49, %50 : vector<2x128xf32>
    %52 = vector.broadcast %8 : vector<1x128xf32> to vector<2x128xf32>
    %53 = arith.addf %51, %52 : vector<2x128xf32>
    %54 = vector.extract_strided_slice %53 {offsets = [0, 0], sizes = [2, 32], strides = [1, 1]} : vector<2x128xf32> to vector<2x32xf32>
    %55 = vector.extract_strided_slice %53 {offsets = [0, 32], sizes = [2, 32], strides = [1, 1]} : vector<2x128xf32> to vector<2x32xf32>
    %56 = vector.extract_strided_slice %53 {offsets = [0, 64], sizes = [2, 32], strides = [1, 1]} : vector<2x128xf32> to vector<2x32xf32>
    %57 = vector.extract_strided_slice %53 {offsets = [0, 96], sizes = [2, 32], strides = [1, 1]} : vector<2x128xf32> to vector<2x32xf32>
    %58 = arith.mulf %55, %30 : vector<2x32xf32>
    %59 = arith.mulf %54, %56 : vector<2x32xf32>
    %60 = arith.addf %58, %59 : vector<2x32xf32>
    %61 = math.tanh %60 : vector<2x32xf32>
    %62 = arith.mulf %57, %61 : vector<2x32xf32>
    %63 = arith.truncf %62 : vector<2x32xf32> to vector<2x32xbf16>
    %cst_19 = arith.constant dense<0.000000e+00> : vector<2x256xf32>
    %64 = tpu.matmul %63, %0, %cst_19 {dimension_numbers = #tpu.dot_dimension_numbers<[1], [0], [0], [1], [0, 0, 1, 1], [], []>} : vector<2x32xbf16>, vector<32x256xbf16>, vector<2x256xf32> -> vector<2x256xf32>
    %65 = vector.extract_strided_slice %64 {offsets = [0, 128], sizes = [2, 128], strides = [1, 1]} : vector<2x256xf32> to vector<2x128xf32>
    %66 = vector.broadcast %3 : vector<1x128xf32> to vector<2x128xf32>
    %67 = arith.addf %65, %66 : vector<2x128xf32>
    %c0_20 = arith.constant 0 : index
    %c2 = arith.constant 2 : index
    %68 = memref.load %arg0[%c0_20, %c2] : memref<2x8xi32, #tpu.memory_space<smem>>
    %69 = arith.index_cast %68 : i32 to index
    %c0_21 = arith.constant 0 : index
    %70 = vector.load %arg2[%69, %c0_21] : memref<48x128xf32, #tpu.memory_space<vmem>>, vector<1x128xf32>
    %c1_22 = arith.constant 1 : index
    %c2_23 = arith.constant 2 : index
    %71 = memref.load %arg0[%c1_22, %c2_23] : memref<2x8xi32, #tpu.memory_space<smem>>
    %72 = arith.index_cast %71 : i32 to index
    %c0_24 = arith.constant 0 : index
    %73 = vector.load %arg2[%72, %c0_24] : memref<48x128xf32, #tpu.memory_space<vmem>>, vector<1x128xf32>
    %74 = tpu.concatenate %70, %73 in 0 : vector<1x128xf32>, vector<1x128xf32> -> vector<2x128xf32>
    %75 = vector.extract_strided_slice %64 {offsets = [0, 0], sizes = [2, 128], strides = [1, 1]} : vector<2x256xf32> to vector<2x128xf32>
    %76 = arith.addf %74, %75 : vector<2x128xf32>
    %77 = vector.broadcast %7 : vector<1x128xf32> to vector<2x128xf32>
    %78 = arith.mulf %76, %77 : vector<2x128xf32>
    %79 = math.tanh %78 : vector<2x128xf32>
    %80 = vector.broadcast %7 : vector<1x128xf32> to vector<2x128xf32>
    %81 = arith.mulf %79, %80 : vector<2x128xf32>
    %82 = vector.broadcast %8 : vector<1x128xf32> to vector<2x128xf32>
    %83 = arith.addf %81, %82 : vector<2x128xf32>
    %84 = vector.extract_strided_slice %83 {offsets = [0, 0], sizes = [2, 32], strides = [1, 1]} : vector<2x128xf32> to vector<2x32xf32>
    %85 = vector.extract_strided_slice %83 {offsets = [0, 32], sizes = [2, 32], strides = [1, 1]} : vector<2x128xf32> to vector<2x32xf32>
    %86 = vector.extract_strided_slice %83 {offsets = [0, 64], sizes = [2, 32], strides = [1, 1]} : vector<2x128xf32> to vector<2x32xf32>
    %87 = vector.extract_strided_slice %83 {offsets = [0, 96], sizes = [2, 32], strides = [1, 1]} : vector<2x128xf32> to vector<2x32xf32>
    %88 = arith.mulf %85, %60 : vector<2x32xf32>
    %89 = arith.mulf %84, %86 : vector<2x32xf32>
    %90 = arith.addf %88, %89 : vector<2x32xf32>
    %91 = math.tanh %90 : vector<2x32xf32>
    %92 = arith.mulf %87, %91 : vector<2x32xf32>
    %93 = arith.truncf %92 : vector<2x32xf32> to vector<2x32xbf16>
    %cst_25 = arith.constant dense<0.000000e+00> : vector<2x256xf32>
    %94 = tpu.matmul %93, %0, %cst_25 {dimension_numbers = #tpu.dot_dimension_numbers<[1], [0], [0], [1], [0, 0, 1, 1], [], []>} : vector<2x32xbf16>, vector<32x256xbf16>, vector<2x256xf32> -> vector<2x256xf32>
    %95 = vector.extract_strided_slice %94 {offsets = [0, 128], sizes = [2, 128], strides = [1, 1]} : vector<2x256xf32> to vector<2x128xf32>
    %96 = vector.broadcast %3 : vector<1x128xf32> to vector<2x128xf32>
    %97 = arith.addf %95, %96 : vector<2x128xf32>
    %c0_26 = arith.constant 0 : index
    %c3 = arith.constant 3 : index
    %98 = memref.load %arg0[%c0_26, %c3] : memref<2x8xi32, #tpu.memory_space<smem>>
    %99 = arith.index_cast %98 : i32 to index
    %c0_27 = arith.constant 0 : index
    %100 = vector.load %arg2[%99, %c0_27] : memref<48x128xf32, #tpu.memory_space<vmem>>, vector<1x128xf32>
    %c1_28 = arith.constant 1 : index
    %c3_29 = arith.constant 3 : index
    %101 = memref.load %arg0[%c1_28, %c3_29] : memref<2x8xi32, #tpu.memory_space<smem>>
    %102 = arith.index_cast %101 : i32 to index
    %c0_30 = arith.constant 0 : index
    %103 = vector.load %arg2[%102, %c0_30] : memref<48x128xf32, #tpu.memory_space<vmem>>, vector<1x128xf32>
    %104 = tpu.concatenate %100, %103 in 0 : vector<1x128xf32>, vector<1x128xf32> -> vector<2x128xf32>
    %105 = vector.extract_strided_slice %94 {offsets = [0, 0], sizes = [2, 128], strides = [1, 1]} : vector<2x256xf32> to vector<2x128xf32>
    %106 = arith.addf %104, %105 : vector<2x128xf32>
    %107 = vector.broadcast %7 : vector<1x128xf32> to vector<2x128xf32>
    %108 = arith.mulf %106, %107 : vector<2x128xf32>
    %109 = math.tanh %108 : vector<2x128xf32>
    %110 = vector.broadcast %7 : vector<1x128xf32> to vector<2x128xf32>
    %111 = arith.mulf %109, %110 : vector<2x128xf32>
    %112 = vector.broadcast %8 : vector<1x128xf32> to vector<2x128xf32>
    %113 = arith.addf %111, %112 : vector<2x128xf32>
    %114 = vector.extract_strided_slice %113 {offsets = [0, 0], sizes = [2, 32], strides = [1, 1]} : vector<2x128xf32> to vector<2x32xf32>
    %115 = vector.extract_strided_slice %113 {offsets = [0, 32], sizes = [2, 32], strides = [1, 1]} : vector<2x128xf32> to vector<2x32xf32>
    %116 = vector.extract_strided_slice %113 {offsets = [0, 64], sizes = [2, 32], strides = [1, 1]} : vector<2x128xf32> to vector<2x32xf32>
    %117 = vector.extract_strided_slice %113 {offsets = [0, 96], sizes = [2, 32], strides = [1, 1]} : vector<2x128xf32> to vector<2x32xf32>
    %118 = arith.mulf %115, %90 : vector<2x32xf32>
    %119 = arith.mulf %114, %116 : vector<2x32xf32>
    %120 = arith.addf %118, %119 : vector<2x32xf32>
    %121 = math.tanh %120 : vector<2x32xf32>
    %122 = arith.mulf %117, %121 : vector<2x32xf32>
    %123 = arith.truncf %122 : vector<2x32xf32> to vector<2x32xbf16>
    %cst_31 = arith.constant dense<0.000000e+00> : vector<2x256xf32>
    %124 = tpu.matmul %123, %0, %cst_31 {dimension_numbers = #tpu.dot_dimension_numbers<[1], [0], [0], [1], [0, 0, 1, 1], [], []>} : vector<2x32xbf16>, vector<32x256xbf16>, vector<2x256xf32> -> vector<2x256xf32>
    %125 = vector.extract_strided_slice %124 {offsets = [0, 128], sizes = [2, 128], strides = [1, 1]} : vector<2x256xf32> to vector<2x128xf32>
    %126 = vector.broadcast %3 : vector<1x128xf32> to vector<2x128xf32>
    %127 = arith.addf %125, %126 : vector<2x128xf32>
    %c0_32 = arith.constant 0 : index
    %c4 = arith.constant 4 : index
    %128 = memref.load %arg0[%c0_32, %c4] : memref<2x8xi32, #tpu.memory_space<smem>>
    %129 = arith.index_cast %128 : i32 to index
    %c0_33 = arith.constant 0 : index
    %130 = vector.load %arg2[%129, %c0_33] : memref<48x128xf32, #tpu.memory_space<vmem>>, vector<1x128xf32>
    %c1_34 = arith.constant 1 : index
    %c4_35 = arith.constant 4 : index
    %131 = memref.load %arg0[%c1_34, %c4_35] : memref<2x8xi32, #tpu.memory_space<smem>>
    %132 = arith.index_cast %131 : i32 to index
    %c0_36 = arith.constant 0 : index
    %133 = vector.load %arg2[%132, %c0_36] : memref<48x128xf32, #tpu.memory_space<vmem>>, vector<1x128xf32>
    %134 = tpu.concatenate %130, %133 in 0 : vector<1x128xf32>, vector<1x128xf32> -> vector<2x128xf32>
    %135 = vector.extract_strided_slice %124 {offsets = [0, 0], sizes = [2, 128], strides = [1, 1]} : vector<2x256xf32> to vector<2x128xf32>
    %136 = arith.addf %134, %135 : vector<2x128xf32>
    %137 = vector.broadcast %7 : vector<1x128xf32> to vector<2x128xf32>
    %138 = arith.mulf %136, %137 : vector<2x128xf32>
    %139 = math.tanh %138 : vector<2x128xf32>
    %140 = vector.broadcast %7 : vector<1x128xf32> to vector<2x128xf32>
    %141 = arith.mulf %139, %140 : vector<2x128xf32>
    %142 = vector.broadcast %8 : vector<1x128xf32> to vector<2x128xf32>
    %143 = arith.addf %141, %142 : vector<2x128xf32>
    %144 = vector.extract_strided_slice %143 {offsets = [0, 0], sizes = [2, 32], strides = [1, 1]} : vector<2x128xf32> to vector<2x32xf32>
    %145 = vector.extract_strided_slice %143 {offsets = [0, 32], sizes = [2, 32], strides = [1, 1]} : vector<2x128xf32> to vector<2x32xf32>
    %146 = vector.extract_strided_slice %143 {offsets = [0, 64], sizes = [2, 32], strides = [1, 1]} : vector<2x128xf32> to vector<2x32xf32>
    %147 = vector.extract_strided_slice %143 {offsets = [0, 96], sizes = [2, 32], strides = [1, 1]} : vector<2x128xf32> to vector<2x32xf32>
    %148 = arith.mulf %145, %120 : vector<2x32xf32>
    %149 = arith.mulf %144, %146 : vector<2x32xf32>
    %150 = arith.addf %148, %149 : vector<2x32xf32>
    %151 = math.tanh %150 : vector<2x32xf32>
    %152 = arith.mulf %147, %151 : vector<2x32xf32>
    %153 = arith.truncf %152 : vector<2x32xf32> to vector<2x32xbf16>
    %cst_37 = arith.constant dense<0.000000e+00> : vector<2x256xf32>
    %154 = tpu.matmul %153, %0, %cst_37 {dimension_numbers = #tpu.dot_dimension_numbers<[1], [0], [0], [1], [0, 0, 1, 1], [], []>} : vector<2x32xbf16>, vector<32x256xbf16>, vector<2x256xf32> -> vector<2x256xf32>
    %155 = vector.extract_strided_slice %154 {offsets = [0, 128], sizes = [2, 128], strides = [1, 1]} : vector<2x256xf32> to vector<2x128xf32>
    %156 = vector.broadcast %3 : vector<1x128xf32> to vector<2x128xf32>
    %157 = arith.addf %155, %156 : vector<2x128xf32>
    %c0_38 = arith.constant 0 : index
    %c5 = arith.constant 5 : index
    %158 = memref.load %arg0[%c0_38, %c5] : memref<2x8xi32, #tpu.memory_space<smem>>
    %159 = arith.index_cast %158 : i32 to index
    %c0_39 = arith.constant 0 : index
    %160 = vector.load %arg2[%159, %c0_39] : memref<48x128xf32, #tpu.memory_space<vmem>>, vector<1x128xf32>
    %c1_40 = arith.constant 1 : index
    %c5_41 = arith.constant 5 : index
    %161 = memref.load %arg0[%c1_40, %c5_41] : memref<2x8xi32, #tpu.memory_space<smem>>
    %162 = arith.index_cast %161 : i32 to index
    %c0_42 = arith.constant 0 : index
    %163 = vector.load %arg2[%162, %c0_42] : memref<48x128xf32, #tpu.memory_space<vmem>>, vector<1x128xf32>
    %164 = tpu.concatenate %160, %163 in 0 : vector<1x128xf32>, vector<1x128xf32> -> vector<2x128xf32>
    %165 = vector.extract_strided_slice %154 {offsets = [0, 0], sizes = [2, 128], strides = [1, 1]} : vector<2x256xf32> to vector<2x128xf32>
    %166 = arith.addf %164, %165 : vector<2x128xf32>
    %167 = vector.broadcast %7 : vector<1x128xf32> to vector<2x128xf32>
    %168 = arith.mulf %166, %167 : vector<2x128xf32>
    %169 = math.tanh %168 : vector<2x128xf32>
    %170 = vector.broadcast %7 : vector<1x128xf32> to vector<2x128xf32>
    %171 = arith.mulf %169, %170 : vector<2x128xf32>
    %172 = vector.broadcast %8 : vector<1x128xf32> to vector<2x128xf32>
    %173 = arith.addf %171, %172 : vector<2x128xf32>
    %174 = vector.extract_strided_slice %173 {offsets = [0, 0], sizes = [2, 32], strides = [1, 1]} : vector<2x128xf32> to vector<2x32xf32>
    %175 = vector.extract_strided_slice %173 {offsets = [0, 32], sizes = [2, 32], strides = [1, 1]} : vector<2x128xf32> to vector<2x32xf32>
    %176 = vector.extract_strided_slice %173 {offsets = [0, 64], sizes = [2, 32], strides = [1, 1]} : vector<2x128xf32> to vector<2x32xf32>
    %177 = vector.extract_strided_slice %173 {offsets = [0, 96], sizes = [2, 32], strides = [1, 1]} : vector<2x128xf32> to vector<2x32xf32>
    %178 = arith.mulf %175, %150 : vector<2x32xf32>
    %179 = arith.mulf %174, %176 : vector<2x32xf32>
    %180 = arith.addf %178, %179 : vector<2x32xf32>
    %181 = math.tanh %180 : vector<2x32xf32>
    %182 = arith.mulf %177, %181 : vector<2x32xf32>
    %183 = arith.truncf %182 : vector<2x32xf32> to vector<2x32xbf16>
    %cst_43 = arith.constant dense<0.000000e+00> : vector<2x256xf32>
    %184 = tpu.matmul %183, %0, %cst_43 {dimension_numbers = #tpu.dot_dimension_numbers<[1], [0], [0], [1], [0, 0, 1, 1], [], []>} : vector<2x32xbf16>, vector<32x256xbf16>, vector<2x256xf32> -> vector<2x256xf32>
    %185 = vector.extract_strided_slice %184 {offsets = [0, 128], sizes = [2, 128], strides = [1, 1]} : vector<2x256xf32> to vector<2x128xf32>
    %186 = vector.broadcast %3 : vector<1x128xf32> to vector<2x128xf32>
    %187 = arith.addf %185, %186 : vector<2x128xf32>
    %c0_44 = arith.constant 0 : index
    %c6 = arith.constant 6 : index
    %188 = memref.load %arg0[%c0_44, %c6] : memref<2x8xi32, #tpu.memory_space<smem>>
    %189 = arith.index_cast %188 : i32 to index
    %c0_45 = arith.constant 0 : index
    %190 = vector.load %arg2[%189, %c0_45] : memref<48x128xf32, #tpu.memory_space<vmem>>, vector<1x128xf32>
    %c1_46 = arith.constant 1 : index
    %c6_47 = arith.constant 6 : index
    %191 = memref.load %arg0[%c1_46, %c6_47] : memref<2x8xi32, #tpu.memory_space<smem>>
    %192 = arith.index_cast %191 : i32 to index
    %c0_48 = arith.constant 0 : index
    %193 = vector.load %arg2[%192, %c0_48] : memref<48x128xf32, #tpu.memory_space<vmem>>, vector<1x128xf32>
    %194 = tpu.concatenate %190, %193 in 0 : vector<1x128xf32>, vector<1x128xf32> -> vector<2x128xf32>
    %195 = vector.extract_strided_slice %184 {offsets = [0, 0], sizes = [2, 128], strides = [1, 1]} : vector<2x256xf32> to vector<2x128xf32>
    %196 = arith.addf %194, %195 : vector<2x128xf32>
    %197 = vector.broadcast %7 : vector<1x128xf32> to vector<2x128xf32>
    %198 = arith.mulf %196, %197 : vector<2x128xf32>
    %199 = math.tanh %198 : vector<2x128xf32>
    %200 = vector.broadcast %7 : vector<1x128xf32> to vector<2x128xf32>
    %201 = arith.mulf %199, %200 : vector<2x128xf32>
    %202 = vector.broadcast %8 : vector<1x128xf32> to vector<2x128xf32>
    %203 = arith.addf %201, %202 : vector<2x128xf32>
    %204 = vector.extract_strided_slice %203 {offsets = [0, 0], sizes = [2, 32], strides = [1, 1]} : vector<2x128xf32> to vector<2x32xf32>
    %205 = vector.extract_strided_slice %203 {offsets = [0, 32], sizes = [2, 32], strides = [1, 1]} : vector<2x128xf32> to vector<2x32xf32>
    %206 = vector.extract_strided_slice %203 {offsets = [0, 64], sizes = [2, 32], strides = [1, 1]} : vector<2x128xf32> to vector<2x32xf32>
    %207 = vector.extract_strided_slice %203 {offsets = [0, 96], sizes = [2, 32], strides = [1, 1]} : vector<2x128xf32> to vector<2x32xf32>
    %208 = arith.mulf %205, %180 : vector<2x32xf32>
    %209 = arith.mulf %204, %206 : vector<2x32xf32>
    %210 = arith.addf %208, %209 : vector<2x32xf32>
    %211 = math.tanh %210 : vector<2x32xf32>
    %212 = arith.mulf %207, %211 : vector<2x32xf32>
    %213 = arith.truncf %212 : vector<2x32xf32> to vector<2x32xbf16>
    %cst_49 = arith.constant dense<0.000000e+00> : vector<2x256xf32>
    %214 = tpu.matmul %213, %0, %cst_49 {dimension_numbers = #tpu.dot_dimension_numbers<[1], [0], [0], [1], [0, 0, 1, 1], [], []>} : vector<2x32xbf16>, vector<32x256xbf16>, vector<2x256xf32> -> vector<2x256xf32>
    %215 = vector.extract_strided_slice %214 {offsets = [0, 128], sizes = [2, 128], strides = [1, 1]} : vector<2x256xf32> to vector<2x128xf32>
    %216 = vector.broadcast %3 : vector<1x128xf32> to vector<2x128xf32>
    %217 = arith.addf %215, %216 : vector<2x128xf32>
    %c0_50 = arith.constant 0 : index
    %c7 = arith.constant 7 : index
    %218 = memref.load %arg0[%c0_50, %c7] : memref<2x8xi32, #tpu.memory_space<smem>>
    %219 = arith.index_cast %218 : i32 to index
    %c0_51 = arith.constant 0 : index
    %220 = vector.load %arg2[%219, %c0_51] : memref<48x128xf32, #tpu.memory_space<vmem>>, vector<1x128xf32>
    %c1_52 = arith.constant 1 : index
    %c7_53 = arith.constant 7 : index
    %221 = memref.load %arg0[%c1_52, %c7_53] : memref<2x8xi32, #tpu.memory_space<smem>>
    %222 = arith.index_cast %221 : i32 to index
    %c0_54 = arith.constant 0 : index
    %223 = vector.load %arg2[%222, %c0_54] : memref<48x128xf32, #tpu.memory_space<vmem>>, vector<1x128xf32>
    %224 = tpu.concatenate %220, %223 in 0 : vector<1x128xf32>, vector<1x128xf32> -> vector<2x128xf32>
    %225 = vector.extract_strided_slice %214 {offsets = [0, 0], sizes = [2, 128], strides = [1, 1]} : vector<2x256xf32> to vector<2x128xf32>
    %226 = arith.addf %224, %225 : vector<2x128xf32>
    %227 = vector.broadcast %7 : vector<1x128xf32> to vector<2x128xf32>
    %228 = arith.mulf %226, %227 : vector<2x128xf32>
    %229 = math.tanh %228 : vector<2x128xf32>
    %230 = vector.broadcast %7 : vector<1x128xf32> to vector<2x128xf32>
    %231 = arith.mulf %229, %230 : vector<2x128xf32>
    %232 = vector.broadcast %8 : vector<1x128xf32> to vector<2x128xf32>
    %233 = arith.addf %231, %232 : vector<2x128xf32>
    %234 = vector.extract_strided_slice %233 {offsets = [0, 0], sizes = [2, 32], strides = [1, 1]} : vector<2x128xf32> to vector<2x32xf32>
    %235 = vector.extract_strided_slice %233 {offsets = [0, 32], sizes = [2, 32], strides = [1, 1]} : vector<2x128xf32> to vector<2x32xf32>
    %236 = vector.extract_strided_slice %233 {offsets = [0, 64], sizes = [2, 32], strides = [1, 1]} : vector<2x128xf32> to vector<2x32xf32>
    %237 = vector.extract_strided_slice %233 {offsets = [0, 96], sizes = [2, 32], strides = [1, 1]} : vector<2x128xf32> to vector<2x32xf32>
    %238 = arith.mulf %235, %210 : vector<2x32xf32>
    %239 = arith.mulf %234, %236 : vector<2x32xf32>
    %240 = arith.addf %238, %239 : vector<2x32xf32>
    %241 = math.tanh %240 : vector<2x32xf32>
    %242 = arith.mulf %237, %241 : vector<2x32xf32>
    %243 = arith.truncf %242 : vector<2x32xf32> to vector<2x32xbf16>
    %cst_55 = arith.constant dense<0.000000e+00> : vector<2x256xf32>
    %244 = tpu.matmul %243, %1, %cst_55 {dimension_numbers = #tpu.dot_dimension_numbers<[1], [0], [0], [1], [0, 0, 1, 1], [], []>} : vector<2x32xbf16>, vector<32x256xbf16>, vector<2x256xf32> -> vector<2x256xf32>
    %245 = vector.extract_strided_slice %244 {offsets = [0, 0], sizes = [2, 128], strides = [1, 1]} : vector<2x256xf32> to vector<2x128xf32>
    %246 = vector.broadcast %3 : vector<1x128xf32> to vector<2x128xf32>
    %247 = arith.addf %245, %246 : vector<2x128xf32>
    %248 = vector.extract_strided_slice %244 {offsets = [0, 128], sizes = [2, 128], strides = [1, 1]} : vector<2x256xf32> to vector<2x128xf32>
    %249 = arith.addf %37, %248 : vector<2x128xf32>
    %250 = vector.broadcast %7 : vector<1x128xf32> to vector<2x128xf32>
    %251 = arith.mulf %249, %250 : vector<2x128xf32>
    %252 = math.tanh %251 : vector<2x128xf32>
    %253 = vector.broadcast %7 : vector<1x128xf32> to vector<2x128xf32>
    %254 = arith.mulf %252, %253 : vector<2x128xf32>
    %255 = vector.broadcast %8 : vector<1x128xf32> to vector<2x128xf32>
    %256 = arith.addf %254, %255 : vector<2x128xf32>
    %257 = vector.extract_strided_slice %256 {offsets = [0, 0], sizes = [2, 32], strides = [1, 1]} : vector<2x128xf32> to vector<2x32xf32>
    %258 = vector.extract_strided_slice %256 {offsets = [0, 32], sizes = [2, 32], strides = [1, 1]} : vector<2x128xf32> to vector<2x32xf32>
    %259 = vector.extract_strided_slice %256 {offsets = [0, 64], sizes = [2, 32], strides = [1, 1]} : vector<2x128xf32> to vector<2x32xf32>
    %260 = vector.extract_strided_slice %256 {offsets = [0, 96], sizes = [2, 32], strides = [1, 1]} : vector<2x128xf32> to vector<2x32xf32>
    %261 = arith.mulf %258, %240 : vector<2x32xf32>
    %262 = arith.mulf %257, %259 : vector<2x32xf32>
    %263 = arith.addf %261, %262 : vector<2x32xf32>
    %264 = math.tanh %263 : vector<2x32xf32>
    %265 = arith.mulf %260, %264 : vector<2x32xf32>
    %266 = arith.truncf %265 : vector<2x32xf32> to vector<2x32xbf16>
    %cst_56 = arith.constant dense<0.000000e+00> : vector<2x128xf32>
    %267 = tpu.matmul %266, %2, %cst_56 {dimension_numbers = #tpu.dot_dimension_numbers<[1], [0], [0], [1], [0, 0, 1, 1], [], []>} : vector<2x32xbf16>, vector<32x128xbf16>, vector<2x128xf32> -> vector<2x128xf32>
    %268 = arith.addf %67, %267 : vector<2x128xf32>
    %269 = vector.broadcast %7 : vector<1x128xf32> to vector<2x128xf32>
    %270 = arith.mulf %268, %269 : vector<2x128xf32>
    %271 = math.tanh %270 : vector<2x128xf32>
    %272 = vector.broadcast %7 : vector<1x128xf32> to vector<2x128xf32>
    %273 = arith.mulf %271, %272 : vector<2x128xf32>
    %274 = vector.broadcast %8 : vector<1x128xf32> to vector<2x128xf32>
    %275 = arith.addf %273, %274 : vector<2x128xf32>
    %276 = vector.extract_strided_slice %275 {offsets = [0, 0], sizes = [2, 32], strides = [1, 1]} : vector<2x128xf32> to vector<2x32xf32>
    %277 = vector.extract_strided_slice %275 {offsets = [0, 32], sizes = [2, 32], strides = [1, 1]} : vector<2x128xf32> to vector<2x32xf32>
    %278 = vector.extract_strided_slice %275 {offsets = [0, 64], sizes = [2, 32], strides = [1, 1]} : vector<2x128xf32> to vector<2x32xf32>
    %279 = vector.extract_strided_slice %275 {offsets = [0, 96], sizes = [2, 32], strides = [1, 1]} : vector<2x128xf32> to vector<2x32xf32>
    %280 = arith.mulf %277, %263 : vector<2x32xf32>
    %281 = arith.mulf %276, %278 : vector<2x32xf32>
    %282 = arith.addf %280, %281 : vector<2x32xf32>
    %283 = math.tanh %282 : vector<2x32xf32>
    %284 = arith.mulf %279, %283 : vector<2x32xf32>
    %285 = arith.truncf %284 : vector<2x32xf32> to vector<2x32xbf16>
    %cst_57 = arith.constant dense<0.000000e+00> : vector<2x128xf32>
    %286 = tpu.matmul %285, %2, %cst_57 {dimension_numbers = #tpu.dot_dimension_numbers<[1], [0], [0], [1], [0, 0, 1, 1], [], []>} : vector<2x32xbf16>, vector<32x128xbf16>, vector<2x128xf32> -> vector<2x128xf32>
    %287 = arith.addf %97, %286 : vector<2x128xf32>
    %288 = vector.broadcast %7 : vector<1x128xf32> to vector<2x128xf32>
    %289 = arith.mulf %287, %288 : vector<2x128xf32>
    %290 = math.tanh %289 : vector<2x128xf32>
    %291 = vector.broadcast %7 : vector<1x128xf32> to vector<2x128xf32>
    %292 = arith.mulf %290, %291 : vector<2x128xf32>
    %293 = vector.broadcast %8 : vector<1x128xf32> to vector<2x128xf32>
    %294 = arith.addf %292, %293 : vector<2x128xf32>
    %295 = vector.extract_strided_slice %294 {offsets = [0, 0], sizes = [2, 32], strides = [1, 1]} : vector<2x128xf32> to vector<2x32xf32>
    %296 = vector.extract_strided_slice %294 {offsets = [0, 32], sizes = [2, 32], strides = [1, 1]} : vector<2x128xf32> to vector<2x32xf32>
    %297 = vector.extract_strided_slice %294 {offsets = [0, 64], sizes = [2, 32], strides = [1, 1]} : vector<2x128xf32> to vector<2x32xf32>
    %298 = vector.extract_strided_slice %294 {offsets = [0, 96], sizes = [2, 32], strides = [1, 1]} : vector<2x128xf32> to vector<2x32xf32>
    %299 = arith.mulf %296, %282 : vector<2x32xf32>
    %300 = arith.mulf %295, %297 : vector<2x32xf32>
    %301 = arith.addf %299, %300 : vector<2x32xf32>
    %302 = math.tanh %301 : vector<2x32xf32>
    %303 = arith.mulf %298, %302 : vector<2x32xf32>
    %304 = arith.truncf %303 : vector<2x32xf32> to vector<2x32xbf16>
    %cst_58 = arith.constant dense<0.000000e+00> : vector<2x128xf32>
    %305 = tpu.matmul %304, %2, %cst_58 {dimension_numbers = #tpu.dot_dimension_numbers<[1], [0], [0], [1], [0, 0, 1, 1], [], []>} : vector<2x32xbf16>, vector<32x128xbf16>, vector<2x128xf32> -> vector<2x128xf32>
    %306 = arith.addf %127, %305 : vector<2x128xf32>
    %307 = vector.broadcast %7 : vector<1x128xf32> to vector<2x128xf32>
    %308 = arith.mulf %306, %307 : vector<2x128xf32>
    %309 = math.tanh %308 : vector<2x128xf32>
    %310 = vector.broadcast %7 : vector<1x128xf32> to vector<2x128xf32>
    %311 = arith.mulf %309, %310 : vector<2x128xf32>
    %312 = vector.broadcast %8 : vector<1x128xf32> to vector<2x128xf32>
    %313 = arith.addf %311, %312 : vector<2x128xf32>
    %314 = vector.extract_strided_slice %313 {offsets = [0, 0], sizes = [2, 32], strides = [1, 1]} : vector<2x128xf32> to vector<2x32xf32>
    %315 = vector.extract_strided_slice %313 {offsets = [0, 32], sizes = [2, 32], strides = [1, 1]} : vector<2x128xf32> to vector<2x32xf32>
    %316 = vector.extract_strided_slice %313 {offsets = [0, 64], sizes = [2, 32], strides = [1, 1]} : vector<2x128xf32> to vector<2x32xf32>
    %317 = vector.extract_strided_slice %313 {offsets = [0, 96], sizes = [2, 32], strides = [1, 1]} : vector<2x128xf32> to vector<2x32xf32>
    %318 = arith.mulf %315, %301 : vector<2x32xf32>
    %319 = arith.mulf %314, %316 : vector<2x32xf32>
    %320 = arith.addf %318, %319 : vector<2x32xf32>
    %321 = math.tanh %320 : vector<2x32xf32>
    %322 = arith.mulf %317, %321 : vector<2x32xf32>
    %323 = arith.truncf %322 : vector<2x32xf32> to vector<2x32xbf16>
    %cst_59 = arith.constant dense<0.000000e+00> : vector<2x128xf32>
    %324 = tpu.matmul %323, %2, %cst_59 {dimension_numbers = #tpu.dot_dimension_numbers<[1], [0], [0], [1], [0, 0, 1, 1], [], []>} : vector<2x32xbf16>, vector<32x128xbf16>, vector<2x128xf32> -> vector<2x128xf32>
    %325 = arith.addf %157, %324 : vector<2x128xf32>
    %326 = vector.broadcast %7 : vector<1x128xf32> to vector<2x128xf32>
    %327 = arith.mulf %325, %326 : vector<2x128xf32>
    %328 = math.tanh %327 : vector<2x128xf32>
    %329 = vector.broadcast %7 : vector<1x128xf32> to vector<2x128xf32>
    %330 = arith.mulf %328, %329 : vector<2x128xf32>
    %331 = vector.broadcast %8 : vector<1x128xf32> to vector<2x128xf32>
    %332 = arith.addf %330, %331 : vector<2x128xf32>
    %333 = vector.extract_strided_slice %332 {offsets = [0, 0], sizes = [2, 32], strides = [1, 1]} : vector<2x128xf32> to vector<2x32xf32>
    %334 = vector.extract_strided_slice %332 {offsets = [0, 32], sizes = [2, 32], strides = [1, 1]} : vector<2x128xf32> to vector<2x32xf32>
    %335 = vector.extract_strided_slice %332 {offsets = [0, 64], sizes = [2, 32], strides = [1, 1]} : vector<2x128xf32> to vector<2x32xf32>
    %336 = vector.extract_strided_slice %332 {offsets = [0, 96], sizes = [2, 32], strides = [1, 1]} : vector<2x128xf32> to vector<2x32xf32>
    %337 = arith.mulf %334, %320 : vector<2x32xf32>
    %338 = arith.mulf %333, %335 : vector<2x32xf32>
    %339 = arith.addf %337, %338 : vector<2x32xf32>
    %340 = math.tanh %339 : vector<2x32xf32>
    %341 = arith.mulf %336, %340 : vector<2x32xf32>
    %342 = arith.truncf %341 : vector<2x32xf32> to vector<2x32xbf16>
    %cst_60 = arith.constant dense<0.000000e+00> : vector<2x128xf32>
    %343 = tpu.matmul %342, %2, %cst_60 {dimension_numbers = #tpu.dot_dimension_numbers<[1], [0], [0], [1], [0, 0, 1, 1], [], []>} : vector<2x32xbf16>, vector<32x128xbf16>, vector<2x128xf32> -> vector<2x128xf32>
    %344 = arith.addf %187, %343 : vector<2x128xf32>
    %345 = vector.broadcast %7 : vector<1x128xf32> to vector<2x128xf32>
    %346 = arith.mulf %344, %345 : vector<2x128xf32>
    %347 = math.tanh %346 : vector<2x128xf32>
    %348 = vector.broadcast %7 : vector<1x128xf32> to vector<2x128xf32>
    %349 = arith.mulf %347, %348 : vector<2x128xf32>
    %350 = vector.broadcast %8 : vector<1x128xf32> to vector<2x128xf32>
    %351 = arith.addf %349, %350 : vector<2x128xf32>
    %352 = vector.extract_strided_slice %351 {offsets = [0, 0], sizes = [2, 32], strides = [1, 1]} : vector<2x128xf32> to vector<2x32xf32>
    %353 = vector.extract_strided_slice %351 {offsets = [0, 32], sizes = [2, 32], strides = [1, 1]} : vector<2x128xf32> to vector<2x32xf32>
    %354 = vector.extract_strided_slice %351 {offsets = [0, 64], sizes = [2, 32], strides = [1, 1]} : vector<2x128xf32> to vector<2x32xf32>
    %355 = vector.extract_strided_slice %351 {offsets = [0, 96], sizes = [2, 32], strides = [1, 1]} : vector<2x128xf32> to vector<2x32xf32>
    %356 = arith.mulf %353, %339 : vector<2x32xf32>
    %357 = arith.mulf %352, %354 : vector<2x32xf32>
    %358 = arith.addf %356, %357 : vector<2x32xf32>
    %359 = math.tanh %358 : vector<2x32xf32>
    %360 = arith.mulf %355, %359 : vector<2x32xf32>
    %361 = arith.truncf %360 : vector<2x32xf32> to vector<2x32xbf16>
    %cst_61 = arith.constant dense<0.000000e+00> : vector<2x128xf32>
    %362 = tpu.matmul %361, %2, %cst_61 {dimension_numbers = #tpu.dot_dimension_numbers<[1], [0], [0], [1], [0, 0, 1, 1], [], []>} : vector<2x32xbf16>, vector<32x128xbf16>, vector<2x128xf32> -> vector<2x128xf32>
    %363 = arith.addf %217, %362 : vector<2x128xf32>
    %364 = vector.broadcast %7 : vector<1x128xf32> to vector<2x128xf32>
    %365 = arith.mulf %363, %364 : vector<2x128xf32>
    %366 = math.tanh %365 : vector<2x128xf32>
    %367 = vector.broadcast %7 : vector<1x128xf32> to vector<2x128xf32>
    %368 = arith.mulf %366, %367 : vector<2x128xf32>
    %369 = vector.broadcast %8 : vector<1x128xf32> to vector<2x128xf32>
    %370 = arith.addf %368, %369 : vector<2x128xf32>
    %371 = vector.extract_strided_slice %370 {offsets = [0, 0], sizes = [2, 32], strides = [1, 1]} : vector<2x128xf32> to vector<2x32xf32>
    %372 = vector.extract_strided_slice %370 {offsets = [0, 32], sizes = [2, 32], strides = [1, 1]} : vector<2x128xf32> to vector<2x32xf32>
    %373 = vector.extract_strided_slice %370 {offsets = [0, 64], sizes = [2, 32], strides = [1, 1]} : vector<2x128xf32> to vector<2x32xf32>
    %374 = vector.extract_strided_slice %370 {offsets = [0, 96], sizes = [2, 32], strides = [1, 1]} : vector<2x128xf32> to vector<2x32xf32>
    %375 = arith.mulf %372, %358 : vector<2x32xf32>
    %376 = arith.mulf %371, %373 : vector<2x32xf32>
    %377 = arith.addf %375, %376 : vector<2x32xf32>
    %378 = math.tanh %377 : vector<2x32xf32>
    %379 = arith.mulf %374, %378 : vector<2x32xf32>
    %380 = arith.truncf %379 : vector<2x32xf32> to vector<2x32xbf16>
    %cst_62 = arith.constant dense<0.000000e+00> : vector<2x128xf32>
    %381 = tpu.matmul %380, %2, %cst_62 {dimension_numbers = #tpu.dot_dimension_numbers<[1], [0], [0], [1], [0, 0, 1, 1], [], []>} : vector<2x32xbf16>, vector<32x128xbf16>, vector<2x128xf32> -> vector<2x128xf32>
    %382 = arith.addf %247, %381 : vector<2x128xf32>
    %383 = vector.broadcast %7 : vector<1x128xf32> to vector<2x128xf32>
    %384 = arith.mulf %382, %383 : vector<2x128xf32>
    %385 = math.tanh %384 : vector<2x128xf32>
    %386 = vector.broadcast %7 : vector<1x128xf32> to vector<2x128xf32>
    %387 = arith.mulf %385, %386 : vector<2x128xf32>
    %388 = vector.broadcast %8 : vector<1x128xf32> to vector<2x128xf32>
    %389 = arith.addf %387, %388 : vector<2x128xf32>
    %390 = vector.extract_strided_slice %389 {offsets = [0, 0], sizes = [2, 32], strides = [1, 1]} : vector<2x128xf32> to vector<2x32xf32>
    %391 = vector.extract_strided_slice %389 {offsets = [0, 32], sizes = [2, 32], strides = [1, 1]} : vector<2x128xf32> to vector<2x32xf32>
    %392 = vector.extract_strided_slice %389 {offsets = [0, 64], sizes = [2, 32], strides = [1, 1]} : vector<2x128xf32> to vector<2x32xf32>
    %393 = vector.extract_strided_slice %389 {offsets = [0, 96], sizes = [2, 32], strides = [1, 1]} : vector<2x128xf32> to vector<2x32xf32>
    %394 = arith.mulf %391, %377 : vector<2x32xf32>
    %395 = arith.mulf %390, %392 : vector<2x32xf32>
    %396 = arith.addf %394, %395 : vector<2x32xf32>
    %397 = math.tanh %396 : vector<2x32xf32>
    %398 = arith.mulf %393, %397 : vector<2x32xf32>
    %c16 = arith.constant 16 : index
    %c0_63 = arith.constant 0 : index
    %399 = vector.load %arg2[%c16, %c0_63] : memref<48x128xf32, #tpu.memory_space<vmem>>, vector<32x12xf32>
    %c13 = arith.constant 13 : index
    %c0_64 = arith.constant 0 : index
    %400 = vector.load %arg2[%c13, %c0_64] : memref<48x128xf32, #tpu.memory_space<vmem>>, vector<1x12xf32>
    %cst_65 = arith.constant dense<0.000000e+00> : vector<2x12xf32>
    %401 = tpu.matmul %398, %399, %cst_65 {dimension_numbers = #tpu.dot_dimension_numbers<[1], [0], [0], [1], [0, 0, 1, 1], [], []>} : vector<2x32xf32>, vector<32x12xf32>, vector<2x12xf32> -> vector<2x12xf32>
    %402 = vector.broadcast %400 : vector<1x12xf32> to vector<2x12xf32>
    %403 = arith.addf %401, %402 : vector<2x12xf32>
    %cst_66 = arith.constant dense<0xFF800000> : vector<2xf32>
    %404 = vector.multi_reduction <maximumf>, %403, %cst_66 [1] : vector<2x12xf32> to vector<2xf32>
    %405 = vector.shape_cast %404 : vector<2xf32> to vector<2x1xf32>
    %406 = vector.broadcast %405 : vector<2x1xf32> to vector<2x12xf32>
    %407 = arith.subf %403, %406 : vector<2x12xf32>
    %408 = math.exp %407 : vector<2x12xf32>
    %cst_67 = arith.constant dense<0.000000e+00> : vector<2xf32>
    %409 = vector.multi_reduction <add>, %408, %cst_67 [1] : vector<2x12xf32> to vector<2xf32>
    %410 = vector.shape_cast %409 : vector<2xf32> to vector<2x1xf32>
    %411 = vector.broadcast %410 : vector<2x1xf32> to vector<2x12xf32>
    %412 = arith.divf %408, %411 : vector<2x12xf32>
    %c0_68 = arith.constant 0 : index
    %c0_69 = arith.constant 0 : index
    %413 = vector.load %arg3[%c0_68, %c0_69] : memref<2x12xf32, #tpu.memory_space<vmem>>, vector<2x12xf32>
    tpu.vector_store %arg3[%c0_68, %c0_69], %412 {strides = array<i32>} : memref<2x12xf32, #tpu.memory_space<vmem>>, vector<2x12xf32>,
    return
  }
}

</mosaic_0001>

<llo_original>
// kernel: my_model_next_act.1
$region0: #{my_model_next_act.1}
  #allocation0 [shape = 'u32[]', space=smem, size = 0x4, offset = 0x4, fixed_abs, tag = 'smem constant byte address 0x4 - core index']
  #allocation1 [shape = 'u32[144,128]{1,0:T(1,128)}', space=vmem, size = 0x12000, scoped, tag = 'internal scratch']
  %s0 = inlined_call_operand.hbm [shape: s32[2,8], index: 0, kind: input, shape index: {}]
  %s1 = inlined_call_operand.hbm [shape: bf16[32,384], index: 1, kind: input, shape index: {}]
  %s2 = inlined_call_operand.hbm [shape: f32[48,128], index: 2, kind: input, shape index: {}]
  %s3 = inlined_call_operand.hbm [shape: f32[2,12], index: 3, kind: output, shape index: {}]
  %s4 = sld [smem:[#allocation0]]
  $region34: #{my_model_next_act.1} parent=0
    _
  %s6 = ssub.s32 1, %s4
  %s7 = scalar_select 0, %s6, %s4
  $region1: #{my_model_next_act.1} parent=0
    #allocation2 [shape = 'u8[1024]{0}', space=smem, size = 0x400, scoped, tag = 'input window, operand 0, single buffered']
    #allocation3 [shape = 's32[1]{0}', space=sflag, size = 0x4, scoped, tag = 'scoped memory for my_model_next_act.1']
    #allocation4 [shape = 's32[1]{0}', space=sflag, size = 0x4, scoped, tag = 'scoped memory for my_model_next_act.1']
    #allocation5 [shape = 's32[1]{0}', space=sflag, size = 0x4, scoped, tag = 'scoped memory for my_model_next_act.1']
    #allocation6 [shape = 'u8[24576]{0}', space=vmem, size = 0x6000, scoped, tag = 'input window, operand 1, single buffered']
    #allocation7 [shape = 'u8[24576]{0}', space=vmem, size = 0x6000, scoped, tag = 'input window, operand 2, single buffered']
    #allocation8 [shape = 's32[1]{0}', space=sflag, size = 0x4, scoped, tag = 'scoped memory for my_model_next_act.1']
    #allocation9 [shape = 'u8[1024]{0}', space=vmem, size = 0x400, scoped, tag = 'output window, operand 0, single buffered']
    %8 = vsyncpa [#allocation5], 0
    %9 = vsyncpa [#allocation3], 0
    %10 = vsyncpa [#allocation8], 0
    %11 = vsyncpa [#allocation4], 0
    // Predicated region
    $region2: #{my_model_next_act.1} parent=1 // pred_check
      _
    $region3: #{my_model_next_act.1} parent=1 // pred_check_branch
      %13 = sbr.rel (0) target = $region5
    $region4: #{my_model_next_act.1} parent=1 // pred_region
      %s15 = ssub.s32 32, 32
      %16 = vsyncadd [#allocation5], %s15
      %19 = dma.hbm_to_smem %s0, 32, [#allocation2], [#allocation5]
    $region5: #{my_model_next_act.1} parent=1 // pred_fallthru
      _
    // Predicated region
    $region6: #{my_model_next_act.1} parent=1 // pred_check
      _
    $region7: #{my_model_next_act.1} parent=1 // pred_check_branch
      %21 = sbr.rel (0) target = $region9
    $region8: #{my_model_next_act.1} parent=1 // pred_region
      %s23 = ssub.s32 768, 768
      %24 = vsyncadd [#allocation3], %s23
      %s25 = sshll.u32 [#allocation6], 4
      %s26 = int_to_ptr.vmem [resolvable:$true] %s25
      %31 = dma.hbm_to_vmem [thread:$0]  %s1, 768, %s26, [#allocation3], 192, 192, 12
    $region9: #{my_model_next_act.1} parent=1 // pred_fallthru
      _
    // Predicated region
    $region10: #{my_model_next_act.1} parent=1 // pred_check
      _
    $region11: #{my_model_next_act.1} parent=1 // pred_check_branch
      %33 = sbr.rel (0) target = $region13
    $region12: #{my_model_next_act.1} parent=1 // pred_region
      %s35 = ssub.s32 768, 768
      %36 = vsyncadd [#allocation8], %s35
      %s37 = sshll.u32 [#allocation7], 4
      %s38 = int_to_ptr.vmem [resolvable:$true] %s37
      %43 = dma.hbm_to_vmem [thread:$0]  %s2, 768, %s38, [#allocation8], 128, 128, 8
    $region13: #{my_model_next_act.1} parent=1 // pred_fallthru
      _
    // Predicated region
    $region14: #{my_model_next_act.1} parent=1 // pred_check
      _
    $region15: #{my_model_next_act.1} parent=1 // pred_check_branch
      %45 = sbr.rel (0) target = $region17
    $region16: #{my_model_next_act.1} parent=1 // pred_region
      %46 = dma.done [#allocation5], 32
    $region17: #{my_model_next_act.1} parent=1 // pred_fallthru
      _
    // Predicated region
    $region18: #{my_model_next_act.1} parent=1 // pred_check
      _
    $region19: #{my_model_next_act.1} parent=1 // pred_check_branch
      %48 = sbr.rel (0) target = $region21
    $region20: #{my_model_next_act.1} parent=1 // pred_region
      %49 = dma.done [#allocation3], 768
    $region21: #{my_model_next_act.1} parent=1 // pred_fallthru
      _
    // Predicated region
    $region22: #{my_model_next_act.1} parent=1 // pred_check
      _
    $region23: #{my_model_next_act.1} parent=1 // pred_check_branch
      %51 = sbr.rel (0) target = $region25
    $region24: #{my_model_next_act.1} parent=1 // pred_region
      %52 = dma.done [#allocation8], 768
    $region25: #{my_model_next_act.1} parent=1 // pred_fallthru
      _
    %53 = sfence
    %v55 = vld [vmem:[#allocation6] sm:$0xff]
    %v56 = vld [vmem:[#allocation6 + $0xc] sm:$0xff]
    %v57 = vld [vmem:[#allocation6 + $0x18] sm:$0xff]
    %v58 = vld [vmem:[#allocation6 + $0x24] sm:$0xff]
    %v59 = vld [vmem:[#allocation6 + $0x4] sm:$0xff]
    %v60 = vld [vmem:[#allocation6 + $0x10] sm:$0xff]
    %v61 = vld [vmem:[#allocation6 + $0x1c] sm:$0xff]
    %v62 = vld [vmem:[#allocation6 + $0x28] sm:$0xff]
    %v63 = vld [vmem:[#allocation6 + $0x8] sm:$0xf]
    %v64 = vld [vmem:[#allocation6 + $0x14] sm:$0xf]
    %v65 = vld [vmem:[#allocation6 + $0x20] sm:$0xf]
    %v66 = vld [vmem:[#allocation6 + $0x2c] sm:$0xf]
    %v67 = vld [vmem:[#allocation7 + $0xc] sm:$0x1]
    %vm68 = vcmask 523264
    %v69 = vsel %vm68, 0.5, 1.0
    %vm70 = vcmask 785408
    %v71 = vsel %vm70, %v69, 0.5
    %v72 = vsel %vm68, 0.5, 0.0
    %v73 = vsel %vm70, %v72, 0.5
    %s74 = sld [smem:[#allocation2]]
    %s75 = scalar_lea.vmem [#allocation7], %s74
    %v76 = vld [vmem:[%s75] sm:$0x1]
    %s77 = sld [smem:[#allocation2 + $0x80]]
    %s78 = scalar_lea.vmem [#allocation7], %s77
    %v79 = vld [vmem:[%s78] sm:$0x1]
    %v81 = vrot.slane %v79, 7
    %vm83 = vcmask 1040384
    %v84 = vsel %vm83, %v76, %v81
    %v85 = vlaneseq
    %v86 = vshrl.u32 %v85, 7
    %v87 = vsub.s32 0, %v86
    %v88 = vrot.slane %v71, %v87
    %v89 = vmul.f32 %v84, %v88
    %v90 = vtanh.pop %v89
    %v91 = vmul.f32 %v90, %v88
    %v92 = vlaneseq
    %v93 = vshrl.u32 %v92, 7
    %v94 = vsub.s32 0, %v93
    %v95 = vrot.slane %v73, %v94
    %v96 = vadd.f32 %v91, %v95
    %v97 = vmul.f32 %v96, 0.0
    %99 = vrot.lane.b32.xlu0 %v96, 64
    %v100 = vpop.permute.xlu0 %99
    %v102 = vmul.f32 %v96, %v100
    %104 = vrot.lane.b32.xlu0 %v102, 32
    %v105 = vpop.permute.xlu0 %104
    %v107 = vadd.f32 %v97, %v105
    %v108 = vtanh.pop %v107
    %110 = vrot.lane.b32.xlu0 %v108, 64
    %v111 = vpop.permute.xlu0 %110
    %v113 = vmul.f32 %v96, %v111
    %v114 = vpack.c.bf16 %v113, %v113
    %116 = vrot.lane.b32.xlu0 %v114, 32
    %v117 = vpop.permute.xlu0 %116
    %v122 = vunpack.c.l.b16 %v55
    %v123 = vunpack.c.h.b16 %v55
    %v124 = vunpack.c.l.b16 %v56
    %v125 = vunpack.c.h.b16 %v56
    %v126 = vunpack.c.l.b16 %v57
    %v127 = vunpack.c.h.b16 %v57
    %v128 = vunpack.c.l.b16 %v58
    %v129 = vunpack.c.h.b16 %v58
    %v130 = vpack.c.b16 %v124, %v122
    %v131 = vpack.c.b16 %v125, %v123
    %v132 = vpack.c.b16 %v128, %v126
    %v133 = vpack.c.b16 %v129, %v127
    %vm138 = vcmask 261120
    %v140 = vsel %vm138, %v117, 0
    %142 = vmatprep.subr.bf16.mxu0 %v131
    %143 = vmatpush1.bf16.msra.mxu0 %v130
    %144 = vmatprep.subr.bf16.mxu0 %v133
    %145 = vmatpush1.bf16.msra.mxu0 %v132
    %146 = vmatprep.subr.bf16.mxu0 0
    %147 = vmatpush1.bf16.msra.mxu0 0
    %148 = vmatprep.subr.bf16.mxu0 0
    %149 = vmatpush1.bf16.msra.mxu0 0
    %150 = vmatprep.subr.bf16.mxu0 0
    %151 = vmatpush1.bf16.msra.mxu0 0
    %152 = vmatprep.subr.bf16.mxu0 0
    %153 = vmatpush1.bf16.msra.mxu0 0
    %154 = vmatprep.subr.bf16.mxu0 0
    %155 = vmatpush1.bf16.msra.mxu0 0
    %156 = vmatprep.subr.bf16.mxu0 0
    %157 = vmatpush1.bf16.msra.mxu0 0
    %158 = vmatprep.subr.bf16.mxu0 0
    %159 = vmatpush1.bf16.msra.mxu0 0
    %160 = vmatprep.subr.bf16.mxu0 0
    %161 = vmatpush1.bf16.msra.mxu0 0
    %162 = vmatprep.subr.bf16.mxu0 0
    %163 = vmatpush1.bf16.msra.mxu0 0
    %164 = vmatprep.subr.bf16.mxu0 0
    %165 = vmatpush1.bf16.msra.mxu0 0
    %166 = vmatprep.subr.bf16.mxu0 0
    %167 = vmatpush1.bf16.msra.mxu0 0
    %168 = vmatprep.subr.bf16.mxu0 0
    %169 = vmatpush1.bf16.msra.mxu0 0
    %170 = vmatprep.subr.bf16.mxu0 0
    %171 = vmatpush1.bf16.msra.mxu0 0
    %172 = vmatprep.subr.bf16.mxu0 0
    %173 = vmatpush1.bf16.msra.mxu0 0
    %174 = vmatprep.mubr.bf16.mxu0 0
    %175 = vmatmul.mubr.bf16.gmra.mrb[0].mxu0 %v140
    %v176 = vpop.f32.mrb[0].mxu0
    %v177 = vadd.f32 0.0, %v176
    %v178 = vpop.f32.mrb[0].mxu0
    %v179 = vadd.f32 0.0, %v178
    %v180 = vpop.f32.mrb[0].mxu0
    %v181 = vpop.f32.mrb[0].mxu0
    %182 = vdwg.mxu0
    %v183 = vlaneseq
    %v184 = vshrl.u32 %v183, 7
    %v185 = vsub.s32 0, %v184
    %v186 = vrot.slane %v67, %v185
    %v187 = vadd.f32 %v179, %v186
    %s188 = sld [smem:[#allocation2 + $0x1]]
    %s189 = scalar_lea.vmem [#allocation7], %s188
    %v190 = vld [vmem:[%s189] sm:$0x1]
    %s191 = sld [smem:[#allocation2 + $0x81]]
    %s192 = scalar_lea.vmem [#allocation7], %s191
    %v193 = vld [vmem:[%s192] sm:$0x1]
    %v195 = vrot.slane %v193, 7
    %v197 = vsel %vm83, %v190, %v195
    %v198 = vadd.f32 %v197, %v177
    %v199 = vmul.f32 %v198, %v88
    %v200 = vtanh.pop %v199
    %v201 = vmul.f32 %v200, %v88
    %v202 = vadd.f32 %v201, %v95
    %v203 = vmul.f32 %v202, %v107
    %205 = vrot.lane.b32.xlu0 %v202, 64
    %v206 = vpop.permute.xlu0 %205
    %v208 = vmul.f32 %v202, %v206
    %210 = vrot.lane.b32.xlu0 %v208, 32
    %v211 = vpop.permute.xlu0 %210
    %v213 = vadd.f32 %v203, %v211
    %v214 = vtanh.pop %v213
    %216 = vrot.lane.b32.xlu0 %v214, 64
    %v217 = vpop.permute.xlu0 %216
    %v219 = vmul.f32 %v202, %v217
    %v220 = vpack.c.bf16 %v219, %v219
    %222 = vrot.lane.b32.xlu0 %v220, 32
    %v223 = vpop.permute.xlu0 %222
    %v225 = vsel %vm138, %v223, 0
    %227 = vmatprep.subr.bf16.mxu0 %v131
    %228 = vmatpush1.bf16.msra.mxu0 %v130
    %229 = vmatprep.subr.bf16.mxu0 %v133
    %230 = vmatpush1.bf16.msra.mxu0 %v132
    %231 = vmatprep.subr.bf16.mxu0 0
    %232 = vmatpush1.bf16.msra.mxu0 0
    %233 = vmatprep.subr.bf16.mxu0 0
    %234 = vmatpush1.bf16.msra.mxu0 0
    %235 = vmatprep.subr.bf16.mxu0 0
    %236 = vmatpush1.bf16.msra.mxu0 0
    %237 = vmatprep.subr.bf16.mxu0 0
    %238 = vmatpush1.bf16.msra.mxu0 0
    %239 = vmatprep.subr.bf16.mxu0 0
    %240 = vmatpush1.bf16.msra.mxu0 0
    %241 = vmatprep.subr.bf16.mxu0 0
    %242 = vmatpush1.bf16.msra.mxu0 0
    %243 = vmatprep.subr.bf16.mxu0 0
    %244 = vmatpush1.bf16.msra.mxu0 0
    %245 = vmatprep.subr.bf16.mxu0 0
    %246 = vmatpush1.bf16.msra.mxu0 0
    %247 = vmatprep.subr.bf16.mxu0 0
    %248 = vmatpush1.bf16.msra.mxu0 0
    %249 = vmatprep.subr.bf16.mxu0 0
    %250 = vmatpush1.bf16.msra.mxu0 0
    %251 = vmatprep.subr.bf16.mxu0 0
    %252 = vmatpush1.bf16.msra.mxu0 0
    %253 = vmatprep.subr.bf16.mxu0 0
    %254 = vmatpush1.bf16.msra.mxu0 0
    %255 = vmatprep.subr.bf16.mxu0 0
    %256 = vmatpush1.bf16.msra.mxu0 0
    %257 = vmatprep.subr.bf16.mxu0 0
    %258 = vmatpush1.bf16.msra.mxu0 0
    %259 = vmatprep.mubr.bf16.mxu0 0
    %260 = vmatmul.mubr.bf16.gmra.mrb[0].mxu0 %v225
    %v261 = vpop.f32.mrb[0].mxu0
    %v262 = vadd.f32 0.0, %v261
    %v263 = vpop.f32.mrb[0].mxu0
    %v264 = vadd.f32 0.0, %v263
    %v265 = vpop.f32.mrb[0].mxu0
    %v266 = vpop.f32.mrb[0].mxu0
    %267 = vdwg.mxu0
    %v268 = vadd.f32 %v264, %v186
    %s269 = sld [smem:[#allocation2 + $0x2]]
    %s270 = scalar_lea.vmem [#allocation7], %s269
    %v271 = vld [vmem:[%s270] sm:$0x1]
    %s272 = sld [smem:[#allocation2 + $0x82]]
    %s273 = scalar_lea.vmem [#allocation7], %s272
    %v274 = vld [vmem:[%s273] sm:$0x1]
    %v276 = vrot.slane %v274, 7
    %v278 = vsel %vm83, %v271, %v276
    %v279 = vadd.f32 %v278, %v262
    %v280 = vmul.f32 %v279, %v88
    %v281 = vtanh.pop %v280
    %v282 = vmul.f32 %v281, %v88
    %v283 = vadd.f32 %v282, %v95
    %v284 = vmul.f32 %v283, %v213
    %286 = vrot.lane.b32.xlu0 %v283, 64
    %v287 = vpop.permute.xlu0 %286
    %v289 = vmul.f32 %v283, %v287
    %291 = vrot.lane.b32.xlu0 %v289, 32
    %v292 = vpop.permute.xlu0 %291
    %v294 = vadd.f32 %v284, %v292
    %v295 = vtanh.pop %v294
    %297 = vrot.lane.b32.xlu0 %v295, 64
    %v298 = vpop.permute.xlu0 %297
    %v300 = vmul.f32 %v283, %v298
    %v301 = vpack.c.bf16 %v300, %v300
    %303 = vrot.lane.b32.xlu0 %v301, 32
    %v304 = vpop.permute.xlu0 %303
    %v306 = vsel %vm138, %v304, 0
    %308 = vmatprep.subr.bf16.mxu0 %v131
    %309 = vmatpush1.bf16.msra.mxu0 %v130
    %310 = vmatprep.subr.bf16.mxu0 %v133
    %311 = vmatpush1.bf16.msra.mxu0 %v132
    %312 = vmatprep.subr.bf16.mxu0 0
    %313 = vmatpush1.bf16.msra.mxu0 0
    %314 = vmatprep.subr.bf16.mxu0 0
    %315 = vmatpush1.bf16.msra.mxu0 0
    %316 = vmatprep.subr.bf16.mxu0 0
    %317 = vmatpush1.bf16.msra.mxu0 0
    %318 = vmatprep.subr.bf16.mxu0 0
    %319 = vmatpush1.bf16.msra.mxu0 0
    %320 = vmatprep.subr.bf16.mxu0 0
    %321 = vmatpush1.bf16.msra.mxu0 0
    %322 = vmatprep.subr.bf16.mxu0 0
    %323 = vmatpush1.bf16.msra.mxu0 0
    %324 = vmatprep.subr.bf16.mxu0 0
    %325 = vmatpush1.bf16.msra.mxu0 0
    %326 = vmatprep.subr.bf16.mxu0 0
    %327 = vmatpush1.bf16.msra.mxu0 0
    %328 = vmatprep.subr.bf16.mxu0 0
    %329 = vmatpush1.bf16.msra.mxu0 0
    %330 = vmatprep.subr.bf16.mxu0 0
    %331 = vmatpush1.bf16.msra.mxu0 0
    %332 = vmatprep.subr.bf16.mxu0 0
    %333 = vmatpush1.bf16.msra.mxu0 0
    %334 = vmatprep.subr.bf16.mxu0 0
    %335 = vmatpush1.bf16.msra.mxu0 0
    %336 = vmatprep.subr.bf16.mxu0 0
    %337 = vmatpush1.bf16.msra.mxu0 0
    %338 = vmatprep.subr.bf16.mxu0 0
    %339 = vmatpush1.bf16.msra.mxu0 0
    %340 = vmatprep.mubr.bf16.mxu0 0
    %341 = vmatmul.mubr.bf16.gmra.mrb[0].mxu0 %v306
    %v342 = vpop.f32.mrb[0].mxu0
    %v343 = vadd.f32 0.0, %v342
    %v344 = vpop.f32.mrb[0].mxu0
    %v345 = vadd.f32 0.0, %v344
    %v346 = vpop.f32.mrb[0].mxu0
    %v347 = vpop.f32.mrb[0].mxu0
    %348 = vdwg.mxu0
    %v349 = vadd.f32 %v345, %v186
    %s350 = sld [smem:[#allocation2 + $0x3]]
    %s351 = scalar_lea.vmem [#allocation7], %s350
    %v352 = vld [vmem:[%s351] sm:$0x1]
    %s353 = sld [smem:[#allocation2 + $0x83]]
    %s354 = scalar_lea.vmem [#allocation7], %s353
    %v355 = vld [vmem:[%s354] sm:$0x1]
    %v357 = vrot.slane %v355, 7
    %v359 = vsel %vm83, %v352, %v357
    %v360 = vadd.f32 %v359, %v343
    %v361 = vmul.f32 %v360, %v88
    %v362 = vtanh.pop %v361
    %v363 = vmul.f32 %v362, %v88
    %v364 = vadd.f32 %v363, %v95
    %v365 = vmul.f32 %v364, %v294
    %367 = vrot.lane.b32.xlu0 %v364, 64
    %v368 = vpop.permute.xlu0 %367
    %v370 = vmul.f32 %v364, %v368
    %372 = vrot.lane.b32.xlu0 %v370, 32
    %v373 = vpop.permute.xlu0 %372
    %v375 = vadd.f32 %v365, %v373
    %v376 = vtanh.pop %v375
    %378 = vrot.lane.b32.xlu0 %v376, 64
    %v379 = vpop.permute.xlu0 %378
    %v381 = vmul.f32 %v364, %v379
    %v382 = vpack.c.bf16 %v381, %v381
    %384 = vrot.lane.b32.xlu0 %v382, 32
    %v385 = vpop.permute.xlu0 %384
    %v387 = vsel %vm138, %v385, 0
    %389 = vmatprep.subr.bf16.mxu0 %v131
    %390 = vmatpush1.bf16.msra.mxu0 %v130
    %391 = vmatprep.subr.bf16.mxu0 %v133
    %392 = vmatpush1.bf16.msra.mxu0 %v132
    %393 = vmatprep.subr.bf16.mxu0 0
    %394 = vmatpush1.bf16.msra.mxu0 0
    %395 = vmatprep.subr.bf16.mxu0 0
    %396 = vmatpush1.bf16.msra.mxu0 0
    %397 = vmatprep.subr.bf16.mxu0 0
    %398 = vmatpush1.bf16.msra.mxu0 0
    %399 = vmatprep.subr.bf16.mxu0 0
    %400 = vmatpush1.bf16.msra.mxu0 0
    %401 = vmatprep.subr.bf16.mxu0 0
    %402 = vmatpush1.bf16.msra.mxu0 0
    %403 = vmatprep.subr.bf16.mxu0 0
    %404 = vmatpush1.bf16.msra.mxu0 0
    %405 = vmatprep.subr.bf16.mxu0 0
    %406 = vmatpush1.bf16.msra.mxu0 0
    %407 = vmatprep.subr.bf16.mxu0 0
    %408 = vmatpush1.bf16.msra.mxu0 0
    %409 = vmatprep.subr.bf16.mxu0 0
    %410 = vmatpush1.bf16.msra.mxu0 0
    %411 = vmatprep.subr.bf16.mxu0 0
    %412 = vmatpush1.bf16.msra.mxu0 0
    %413 = vmatprep.subr.bf16.mxu0 0
    %414 = vmatpush1.bf16.msra.mxu0 0
    %415 = vmatprep.subr.bf16.mxu0 0
    %416 = vmatpush1.bf16.msra.mxu0 0
    %417 = vmatprep.subr.bf16.mxu0 0
    %418 = vmatpush1.bf16.msra.mxu0 0
    %419 = vmatprep.subr.bf16.mxu0 0
    %420 = vmatpush1.bf16.msra.mxu0 0
    %421 = vmatprep.mubr.bf16.mxu0 0
    %422 = vmatmul.mubr.bf16.gmra.mrb[0].mxu0 %v387
    %v423 = vpop.f32.mrb[0].mxu0
    %v424 = vadd.f32 0.0, %v423
    %v425 = vpop.f32.mrb[0].mxu0
    %v426 = vadd.f32 0.0, %v425
    %v427 = vpop.f32.mrb[0].mxu0
    %v428 = vpop.f32.mrb[0].mxu0
    %429 = vdwg.mxu0
    %v430 = vadd.f32 %v426, %v186
    %s431 = sld [smem:[#allocation2 + $0x4]]
    %s432 = scalar_lea.vmem [#allocation7], %s431
    %v433 = vld [vmem:[%s432] sm:$0x1]
    %s434 = sld [smem:[#allocation2 + $0x84]]
    %s435 = scalar_lea.vmem [#allocation7], %s434
    %v436 = vld [vmem:[%s435] sm:$0x1]
    %v438 = vrot.slane %v436, 7
    %v440 = vsel %vm83, %v433, %v438
    %v441 = vadd.f32 %v440, %v424
    %v442 = vmul.f32 %v441, %v88
    %v443 = vtanh.pop %v442
    %v444 = vmul.f32 %v443, %v88
    %v445 = vadd.f32 %v444, %v95
    %v446 = vmul.f32 %v445, %v375
    %448 = vrot.lane.b32.xlu0 %v445, 64
    %v449 = vpop.permute.xlu0 %448
    %v451 = vmul.f32 %v445, %v449
    %453 = vrot.lane.b32.xlu0 %v451, 32
    %v454 = vpop.permute.xlu0 %453
    %v456 = vadd.f32 %v446, %v454
    %v457 = vtanh.pop %v456
    %459 = vrot.lane.b32.xlu0 %v457, 64
    %v460 = vpop.permute.xlu0 %459
    %v462 = vmul.f32 %v445, %v460
    %v463 = vpack.c.bf16 %v462, %v462
    %465 = vrot.lane.b32.xlu0 %v463, 32
    %v466 = vpop.permute.xlu0 %465
    %v468 = vsel %vm138, %v466, 0
    %470 = vmatprep.subr.bf16.mxu0 %v131
    %471 = vmatpush1.bf16.msra.mxu0 %v130
    %472 = vmatprep.subr.bf16.mxu0 %v133
    %473 = vmatpush1.bf16.msra.mxu0 %v132
    %474 = vmatprep.subr.bf16.mxu0 0
    %475 = vmatpush1.bf16.msra.mxu0 0
    %476 = vmatprep.subr.bf16.mxu0 0
    %477 = vmatpush1.bf16.msra.mxu0 0
    %478 = vmatprep.subr.bf16.mxu0 0
    %479 = vmatpush1.bf16.msra.mxu0 0
    %480 = vmatprep.subr.bf16.mxu0 0
    %481 = vmatpush1.bf16.msra.mxu0 0
    %482 = vmatprep.subr.bf16.mxu0 0
    %483 = vmatpush1.bf16.msra.mxu0 0
    %484 = vmatprep.subr.bf16.mxu0 0
    %485 = vmatpush1.bf16.msra.mxu0 0
    %486 = vmatprep.subr.bf16.mxu0 0
    %487 = vmatpush1.bf16.msra.mxu0 0
    %488 = vmatprep.subr.bf16.mxu0 0
    %489 = vmatpush1.bf16.msra.mxu0 0
    %490 = vmatprep.subr.bf16.mxu0 0
    %491 = vmatpush1.bf16.msra.mxu0 0
    %492 = vmatprep.subr.bf16.mxu0 0
    %493 = vmatpush1.bf16.msra.mxu0 0
    %494 = vmatprep.subr.bf16.mxu0 0
    %495 = vmatpush1.bf16.msra.mxu0 0
    %496 = vmatprep.subr.bf16.mxu0 0
    %497 = vmatpush1.bf16.msra.mxu0 0
    %498 = vmatprep.subr.bf16.mxu0 0
    %499 = vmatpush1.bf16.msra.mxu0 0
    %500 = vmatprep.subr.bf16.mxu0 0
    %501 = vmatpush1.bf16.msra.mxu0 0
    %502 = vmatprep.mubr.bf16.mxu0 0
    %503 = vmatmul.mubr.bf16.gmra.mrb[0].mxu0 %v468
    %v504 = vpop.f32.mrb[0].mxu0
    %v505 = vadd.f32 0.0, %v504
    %v506 = vpop.f32.mrb[0].mxu0
    %v507 = vadd.f32 0.0, %v506
    %v508 = vpop.f32.mrb[0].mxu0
    %v509 = vpop.f32.mrb[0].mxu0
    %510 = vdwg.mxu0
    %v511 = vadd.f32 %v507, %v186
    %s512 = sld [smem:[#allocation2 + $0x5]]
    %s513 = scalar_lea.vmem [#allocation7], %s512
    %v514 = vld [vmem:[%s513] sm:$0x1]
    %s515 = sld [smem:[#allocation2 + $0x85]]
    %s516 = scalar_lea.vmem [#allocation7], %s515
    %v517 = vld [vmem:[%s516] sm:$0x1]
    %v519 = vrot.slane %v517, 7
    %v521 = vsel %vm83, %v514, %v519
    %v522 = vadd.f32 %v521, %v505
    %v523 = vmul.f32 %v522, %v88
    %v524 = vtanh.pop %v523
    %v525 = vmul.f32 %v524, %v88
    %v526 = vadd.f32 %v525, %v95
    %v527 = vmul.f32 %v526, %v456
    %529 = vrot.lane.b32.xlu0 %v526, 64
    %v530 = vpop.permute.xlu0 %529
    %v532 = vmul.f32 %v526, %v530
    %534 = vrot.lane.b32.xlu0 %v532, 32
    %v535 = vpop.permute.xlu0 %534
    %v537 = vadd.f32 %v527, %v535
    %v538 = vtanh.pop %v537
    %540 = vrot.lane.b32.xlu0 %v538, 64
    %v541 = vpop.permute.xlu0 %540
    %v543 = vmul.f32 %v526, %v541
    %v544 = vpack.c.bf16 %v543, %v543
    %546 = vrot.lane.b32.xlu0 %v544, 32
    %v547 = vpop.permute.xlu0 %546
    %v549 = vsel %vm138, %v547, 0
    %551 = vmatprep.subr.bf16.mxu0 %v131
    %552 = vmatpush1.bf16.msra.mxu0 %v130
    %553 = vmatprep.subr.bf16.mxu0 %v133
    %554 = vmatpush1.bf16.msra.mxu0 %v132
    %555 = vmatprep.subr.bf16.mxu0 0
    %556 = vmatpush1.bf16.msra.mxu0 0
    %557 = vmatprep.subr.bf16.mxu0 0
    %558 = vmatpush1.bf16.msra.mxu0 0
    %559 = vmatprep.subr.bf16.mxu0 0
    %560 = vmatpush1.bf16.msra.mxu0 0
    %561 = vmatprep.subr.bf16.mxu0 0
    %562 = vmatpush1.bf16.msra.mxu0 0
    %563 = vmatprep.subr.bf16.mxu0 0
    %564 = vmatpush1.bf16.msra.mxu0 0
    %565 = vmatprep.subr.bf16.mxu0 0
    %566 = vmatpush1.bf16.msra.mxu0 0
    %567 = vmatprep.subr.bf16.mxu0 0
    %568 = vmatpush1.bf16.msra.mxu0 0
    %569 = vmatprep.subr.bf16.mxu0 0
    %570 = vmatpush1.bf16.msra.mxu0 0
    %571 = vmatprep.subr.bf16.mxu0 0
    %572 = vmatpush1.bf16.msra.mxu0 0
    %573 = vmatprep.subr.bf16.mxu0 0
    %574 = vmatpush1.bf16.msra.mxu0 0
    %575 = vmatprep.subr.bf16.mxu0 0
    %576 = vmatpush1.bf16.msra.mxu0 0
    %577 = vmatprep.subr.bf16.mxu0 0
    %578 = vmatpush1.bf16.msra.mxu0 0
    %579 = vmatprep.subr.bf16.mxu0 0
    %580 = vmatpush1.bf16.msra.mxu0 0
    %581 = vmatprep.subr.bf16.mxu0 0
    %582 = vmatpush1.bf16.msra.mxu0 0
    %583 = vmatprep.mubr.bf16.mxu0 0
    %584 = vmatmul.mubr.bf16.gmra.mrb[0].mxu0 %v549
    %v585 = vpop.f32.mrb[0].mxu0
    %v586 = vadd.f32 0.0, %v585
    %v587 = vpop.f32.mrb[0].mxu0
    %v588 = vadd.f32 0.0, %v587
    %v589 = vpop.f32.mrb[0].mxu0
    %v590 = vpop.f32.mrb[0].mxu0
    %591 = vdwg.mxu0
    %v592 = vadd.f32 %v588, %v186
    %s593 = sld [smem:[#allocation2 + $0x6]]
    %s594 = scalar_lea.vmem [#allocation7], %s593
    %v595 = vld [vmem:[%s594] sm:$0x1]
    %s596 = sld [smem:[#allocation2 + $0x86]]
    %s597 = scalar_lea.vmem [#allocation7], %s596
    %v598 = vld [vmem:[%s597] sm:$0x1]
    %v600 = vrot.slane %v598, 7
    %v602 = vsel %vm83, %v595, %v600
    %v603 = vadd.f32 %v602, %v586
    %v604 = vmul.f32 %v603, %v88
    %v605 = vtanh.pop %v604
    %v606 = vmul.f32 %v605, %v88
    %v607 = vadd.f32 %v606, %v95
    %v608 = vmul.f32 %v607, %v537
    %610 = vrot.lane.b32.xlu0 %v607, 64
    %v611 = vpop.permute.xlu0 %610
    %v613 = vmul.f32 %v607, %v611
    %615 = vrot.lane.b32.xlu0 %v613, 32
    %v616 = vpop.permute.xlu0 %615
    %v618 = vadd.f32 %v608, %v616
    %v619 = vtanh.pop %v618
    %621 = vrot.lane.b32.xlu0 %v619, 64
    %v622 = vpop.permute.xlu0 %621
    %v624 = vmul.f32 %v607, %v622
    %v625 = vpack.c.bf16 %v624, %v624
    %627 = vrot.lane.b32.xlu0 %v625, 32
    %v628 = vpop.permute.xlu0 %627
    %v630 = vsel %vm138, %v628, 0
    %632 = vmatprep.subr.bf16.mxu0 %v131
    %633 = vmatpush1.bf16.msra.mxu0 %v130
    %634 = vmatprep.subr.bf16.mxu0 %v133
    %635 = vmatpush1.bf16.msra.mxu0 %v132
    %636 = vmatprep.subr.bf16.mxu0 0
    %637 = vmatpush1.bf16.msra.mxu0 0
    %638 = vmatprep.subr.bf16.mxu0 0
    %639 = vmatpush1.bf16.msra.mxu0 0
    %640 = vmatprep.subr.bf16.mxu0 0
    %641 = vmatpush1.bf16.msra.mxu0 0
    %642 = vmatprep.subr.bf16.mxu0 0
    %643 = vmatpush1.bf16.msra.mxu0 0
    %644 = vmatprep.subr.bf16.mxu0 0
    %645 = vmatpush1.bf16.msra.mxu0 0
    %646 = vmatprep.subr.bf16.mxu0 0
    %647 = vmatpush1.bf16.msra.mxu0 0
    %648 = vmatprep.subr.bf16.mxu0 0
    %649 = vmatpush1.bf16.msra.mxu0 0
    %650 = vmatprep.subr.bf16.mxu0 0
    %651 = vmatpush1.bf16.msra.mxu0 0
    %652 = vmatprep.subr.bf16.mxu0 0
    %653 = vmatpush1.bf16.msra.mxu0 0
    %654 = vmatprep.subr.bf16.mxu0 0
    %655 = vmatpush1.bf16.msra.mxu0 0
    %656 = vmatprep.subr.bf16.mxu0 0
    %657 = vmatpush1.bf16.msra.mxu0 0
    %658 = vmatprep.subr.bf16.mxu0 0
    %659 = vmatpush1.bf16.msra.mxu0 0
    %660 = vmatprep.subr.bf16.mxu0 0
    %661 = vmatpush1.bf16.msra.mxu0 0
    %662 = vmatprep.subr.bf16.mxu0 0
    %663 = vmatpush1.bf16.msra.mxu0 0
    %664 = vmatprep.mubr.bf16.mxu0 0
    %665 = vmatmul.mubr.bf16.gmra.mrb[0].mxu0 %v630
    %v666 = vpop.f32.mrb[0].mxu0
    %v667 = vadd.f32 0.0, %v666
    %v668 = vpop.f32.mrb[0].mxu0
    %v669 = vadd.f32 0.0, %v668
    %v670 = vpop.f32.mrb[0].mxu0
    %v671 = vpop.f32.mrb[0].mxu0
    %672 = vdwg.mxu0
    %v673 = vadd.f32 %v669, %v186
    %s674 = sld [smem:[#allocation2 + $0x7]]
    %s675 = scalar_lea.vmem [#allocation7], %s674
    %v676 = vld [vmem:[%s675] sm:$0x1]
    %s677 = sld [smem:[#allocation2 + $0x87]]
    %s678 = scalar_lea.vmem [#allocation7], %s677
    %v679 = vld [vmem:[%s678] sm:$0x1]
    %v681 = vrot.slane %v679, 7
    %v683 = vsel %vm83, %v676, %v681
    %v684 = vadd.f32 %v683, %v667
    %v685 = vmul.f32 %v684, %v88
    %v686 = vtanh.pop %v685
    %v687 = vmul.f32 %v686, %v88
    %v688 = vadd.f32 %v687, %v95
    %v689 = vmul.f32 %v688, %v618
    %691 = vrot.lane.b32.xlu0 %v688, 64
    %v692 = vpop.permute.xlu0 %691
    %v694 = vmul.f32 %v688, %v692
    %696 = vrot.lane.b32.xlu0 %v694, 32
    %v697 = vpop.permute.xlu0 %696
    %v699 = vadd.f32 %v689, %v697
    %v700 = vtanh.pop %v699
    %702 = vrot.lane.b32.xlu0 %v700, 64
    %v703 = vpop.permute.xlu0 %702
    %v705 = vmul.f32 %v688, %v703
    %v706 = vpack.c.bf16 %v705, %v705
    %708 = vrot.lane.b32.xlu0 %v706, 32
    %v709 = vpop.permute.xlu0 %708
    %v714 = vunpack.c.l.b16 %v59
    %v715 = vunpack.c.h.b16 %v59
    %v716 = vunpack.c.l.b16 %v60
    %v717 = vunpack.c.h.b16 %v60
    %v718 = vunpack.c.l.b16 %v61
    %v719 = vunpack.c.h.b16 %v61
    %v720 = vunpack.c.l.b16 %v62
    %v721 = vunpack.c.h.b16 %v62
    %v722 = vpack.c.b16 %v716, %v714
    %v723 = vpack.c.b16 %v717, %v715
    %v724 = vpack.c.b16 %v720, %v718
    %v725 = vpack.c.b16 %v721, %v719
    %v731 = vsel %vm138, %v709, 0
    %733 = vmatprep.subr.bf16.mxu0 %v723
    %734 = vmatpush1.bf16.msra.mxu0 %v722
    %735 = vmatprep.subr.bf16.mxu0 %v725
    %736 = vmatpush1.bf16.msra.mxu0 %v724
    %737 = vmatprep.subr.bf16.mxu0 0
    %738 = vmatpush1.bf16.msra.mxu0 0
    %739 = vmatprep.subr.bf16.mxu0 0
    %740 = vmatpush1.bf16.msra.mxu0 0
    %741 = vmatprep.subr.bf16.mxu0 0
    %742 = vmatpush1.bf16.msra.mxu0 0
    %743 = vmatprep.subr.bf16.mxu0 0
    %744 = vmatpush1.bf16.msra.mxu0 0
    %745 = vmatprep.subr.bf16.mxu0 0
    %746 = vmatpush1.bf16.msra.mxu0 0
    %747 = vmatprep.subr.bf16.mxu0 0
    %748 = vmatpush1.bf16.msra.mxu0 0
    %749 = vmatprep.subr.bf16.mxu0 0
    %750 = vmatpush1.bf16.msra.mxu0 0
    %751 = vmatprep.subr.bf16.mxu0 0
    %752 = vmatpush1.bf16.msra.mxu0 0
    %753 = vmatprep.subr.bf16.mxu0 0
    %754 = vmatpush1.bf16.msra.mxu0 0
    %755 = vmatprep.subr.bf16.mxu0 0
    %756 = vmatpush1.bf16.msra.mxu0 0
    %757 = vmatprep.subr.bf16.mxu0 0
    %758 = vmatpush1.bf16.msra.mxu0 0
    %759 = vmatprep.subr.bf16.mxu0 0
    %760 = vmatpush1.bf16.msra.mxu0 0
    %761 = vmatprep.subr.bf16.mxu0 0
    %762 = vmatpush1.bf16.msra.mxu0 0
    %763 = vmatprep.subr.bf16.mxu0 0
    %764 = vmatpush1.bf16.msra.mxu0 0
    %765 = vmatprep.mubr.bf16.mxu0 0
    %766 = vmatmul.mubr.bf16.gmra.mrb[0].mxu0 %v731
    %v767 = vpop.f32.mrb[0].mxu0
    %v768 = vadd.f32 0.0, %v767
    %v769 = vpop.f32.mrb[0].mxu0
    %v770 = vadd.f32 0.0, %v769
    %v771 = vpop.f32.mrb[0].mxu0
    %v772 = vpop.f32.mrb[0].mxu0
    %773 = vdwg.mxu0
    %v774 = vadd.f32 %v768, %v186
    %v775 = vadd.f32 %v187, %v770
    %v776 = vmul.f32 %v775, %v88
    %v777 = vtanh.pop %v776
    %v778 = vmul.f32 %v777, %v88
    %v779 = vadd.f32 %v778, %v95
    %v780 = vmul.f32 %v779, %v699
    %782 = vrot.lane.b32.xlu0 %v779, 64
    %v783 = vpop.permute.xlu0 %782
    %v785 = vmul.f32 %v779, %v783
    %787 = vrot.lane.b32.xlu0 %v785, 32
    %v788 = vpop.permute.xlu0 %787
    %v790 = vadd.f32 %v780, %v788
    %v791 = vtanh.pop %v790
    %793 = vrot.lane.b32.xlu0 %v791, 64
    %v794 = vpop.permute.xlu0 %793
    %v796 = vmul.f32 %v779, %v794
    %v797 = vpack.c.bf16 %v796, %v796
    %799 = vrot.lane.b32.xlu0 %v797, 32
    %v800 = vpop.permute.xlu0 %799
    %v805 = vunpack.c.l.b16 %v63
    %v806 = vunpack.c.l.b16 %v64
    %v807 = vunpack.c.l.b16 %v65
    %v808 = vunpack.c.l.b16 %v66
    %v809 = vpack.c.b16 %v806, %v805
    %v810 = vpack.c.b16 %v808, %v807
    %v814 = vsel %vm138, %v800, 0
    %816 = vmatprep.subr.bf16.mxu0 0
    %817 = vmatpush1.bf16.msra.mxu0 %v809
    %818 = vmatprep.subr.bf16.mxu0 0
    %819 = vmatpush1.bf16.msra.mxu0 %v810
    %820 = vmatprep.subr.bf16.mxu0 0
    %821 = vmatpush1.bf16.msra.mxu0 0
    %822 = vmatprep.subr.bf16.mxu0 0
    %823 = vmatpush1.bf16.msra.mxu0 0
    %824 = vmatprep.subr.bf16.mxu0 0
    %825 = vmatpush1.bf16.msra.mxu0 0
    %826 = vmatprep.subr.bf16.mxu0 0
    %827 = vmatpush1.bf16.msra.mxu0 0
    %828 = vmatprep.subr.bf16.mxu0 0
    %829 = vmatpush1.bf16.msra.mxu0 0
    %830 = vmatprep.subr.bf16.mxu0 0
    %831 = vmatpush1.bf16.msra.mxu0 0
    %832 = vmatprep.subr.bf16.mxu0 0
    %833 = vmatpush1.bf16.msra.mxu0 0
    %834 = vmatprep.subr.bf16.mxu0 0
    %835 = vmatpush1.bf16.msra.mxu0 0
    %836 = vmatprep.subr.bf16.mxu0 0
    %837 = vmatpush1.bf16.msra.mxu0 0
    %838 = vmatprep.subr.bf16.mxu0 0
    %839 = vmatpush1.bf16.msra.mxu0 0
    %840 = vmatprep.subr.bf16.mxu0 0
    %841 = vmatpush1.bf16.msra.mxu0 0
    %842 = vmatprep.subr.bf16.mxu0 0
    %843 = vmatpush1.bf16.msra.mxu0 0
    %844 = vmatprep.subr.bf16.mxu0 0
    %845 = vmatpush1.bf16.msra.mxu0 0
    %846 = vmatprep.subr.bf16.mxu0 0
    %847 = vmatpush1.bf16.msra.mxu0 0
    %848 = vmatprep.mubr.bf16.mxu0 0
    %849 = vmatmul.mubr.bf16.gmra.mrb[0].mxu0 %v814
    %v850 = vpop.f32.mrb[0].mxu0
    %v851 = vadd.f32 0.0, %v850
    %v852 = vpop.f32.mrb[0].mxu0
    %v853 = vpop.f32.mrb[0].mxu0
    %v854 = vpop.f32.mrb[0].mxu0
    %855 = vdwg.mxu0
    %v856 = vadd.f32 %v268, %v851
    %v857 = vmul.f32 %v856, %v88
    %v858 = vtanh.pop %v857
    %v859 = vmul.f32 %v858, %v88
    %v860 = vadd.f32 %v859, %v95
    %v861 = vmul.f32 %v860, %v790
    %863 = vrot.lane.b32.xlu0 %v860, 64
    %v864 = vpop.permute.xlu0 %863
    %v866 = vmul.f32 %v860, %v864
    %868 = vrot.lane.b32.xlu0 %v866, 32
    %v869 = vpop.permute.xlu0 %868
    %v871 = vadd.f32 %v861, %v869
    %v872 = vtanh.pop %v871
    %874 = vrot.lane.b32.xlu0 %v872, 64
    %v875 = vpop.permute.xlu0 %874
    %v877 = vmul.f32 %v860, %v875
    %v878 = vpack.c.bf16 %v877, %v877
    %880 = vrot.lane.b32.xlu0 %v878, 32
    %v881 = vpop.permute.xlu0 %880
    %v883 = vsel %vm138, %v881, 0
    %885 = vmatprep.subr.bf16.mxu0 0
    %886 = vmatpush1.bf16.msra.mxu0 %v809
    %887 = vmatprep.subr.bf16.mxu0 0
    %888 = vmatpush1.bf16.msra.mxu0 %v810
    %889 = vmatprep.subr.bf16.mxu0 0
    %890 = vmatpush1.bf16.msra.mxu0 0
    %891 = vmatprep.subr.bf16.mxu0 0
    %892 = vmatpush1.bf16.msra.mxu0 0
    %893 = vmatprep.subr.bf16.mxu0 0
    %894 = vmatpush1.bf16.msra.mxu0 0
    %895 = vmatprep.subr.bf16.mxu0 0
    %896 = vmatpush1.bf16.msra.mxu0 0
    %897 = vmatprep.subr.bf16.mxu0 0
    %898 = vmatpush1.bf16.msra.mxu0 0
    %899 = vmatprep.subr.bf16.mxu0 0
    %900 = vmatpush1.bf16.msra.mxu0 0
    %901 = vmatprep.subr.bf16.mxu0 0
    %902 = vmatpush1.bf16.msra.mxu0 0
    %903 = vmatprep.subr.bf16.mxu0 0
    %904 = vmatpush1.bf16.msra.mxu0 0
    %905 = vmatprep.subr.bf16.mxu0 0
    %906 = vmatpush1.bf16.msra.mxu0 0
    %907 = vmatprep.subr.bf16.mxu0 0
    %908 = vmatpush1.bf16.msra.mxu0 0
    %909 = vmatprep.subr.bf16.mxu0 0
    %910 = vmatpush1.bf16.msra.mxu0 0
    %911 = vmatprep.subr.bf16.mxu0 0
    %912 = vmatpush1.bf16.msra.mxu0 0
    %913 = vmatprep.subr.bf16.mxu0 0
    %914 = vmatpush1.bf16.msra.mxu0 0
    %915 = vmatprep.subr.bf16.mxu0 0
    %916 = vmatpush1.bf16.msra.mxu0 0
    %917 = vmatprep.mubr.bf16.mxu0 0
    %918 = vmatmul.mubr.bf16.gmra.mrb[0].mxu0 %v883
    %v919 = vpop.f32.mrb[0].mxu0
    %v920 = vadd.f32 0.0, %v919
    %v921 = vpop.f32.mrb[0].mxu0
    %v922 = vpop.f32.mrb[0].mxu0
    %v923 = vpop.f32.mrb[0].mxu0
    %924 = vdwg.mxu0
    %v925 = vadd.f32 %v349, %v920
    %v926 = vmul.f32 %v925, %v88
    %v927 = vtanh.pop %v926
    %v928 = vmul.f32 %v927, %v88
    %v929 = vadd.f32 %v928, %v95
    %v930 = vmul.f32 %v929, %v871
    %932 = vrot.lane.b32.xlu0 %v929, 64
    %v933 = vpop.permute.xlu0 %932
    %v935 = vmul.f32 %v929, %v933
    %937 = vrot.lane.b32.xlu0 %v935, 32
    %v938 = vpop.permute.xlu0 %937
    %v940 = vadd.f32 %v930, %v938
    %v941 = vtanh.pop %v940
    %943 = vrot.lane.b32.xlu0 %v941, 64
    %v944 = vpop.permute.xlu0 %943
    %v946 = vmul.f32 %v929, %v944
    %v947 = vpack.c.bf16 %v946, %v946
    %949 = vrot.lane.b32.xlu0 %v947, 32
    %v950 = vpop.permute.xlu0 %949
    %v952 = vsel %vm138, %v950, 0
    %954 = vmatprep.subr.bf16.mxu0 0
    %955 = vmatpush1.bf16.msra.mxu0 %v809
    %956 = vmatprep.subr.bf16.mxu0 0
    %957 = vmatpush1.bf16.msra.mxu0 %v810
    %958 = vmatprep.subr.bf16.mxu0 0
    %959 = vmatpush1.bf16.msra.mxu0 0
    %960 = vmatprep.subr.bf16.mxu0 0
    %961 = vmatpush1.bf16.msra.mxu0 0
    %962 = vmatprep.subr.bf16.mxu0 0
    %963 = vmatpush1.bf16.msra.mxu0 0
    %964 = vmatprep.subr.bf16.mxu0 0
    %965 = vmatpush1.bf16.msra.mxu0 0
    %966 = vmatprep.subr.bf16.mxu0 0
    %967 = vmatpush1.bf16.msra.mxu0 0
    %968 = vmatprep.subr.bf16.mxu0 0
    %969 = vmatpush1.bf16.msra.mxu0 0
    %970 = vmatprep.subr.bf16.mxu0 0
    %971 = vmatpush1.bf16.msra.mxu0 0
    %972 = vmatprep.subr.bf16.mxu0 0
    %973 = vmatpush1.bf16.msra.mxu0 0
    %974 = vmatprep.subr.bf16.mxu0 0
    %975 = vmatpush1.bf16.msra.mxu0 0
    %976 = vmatprep.subr.bf16.mxu0 0
    %977 = vmatpush1.bf16.msra.mxu0 0
    %978 = vmatprep.subr.bf16.mxu0 0
    %979 = vmatpush1.bf16.msra.mxu0 0
    %980 = vmatprep.subr.bf16.mxu0 0
    %981 = vmatpush1.bf16.msra.mxu0 0
    %982 = vmatprep.subr.bf16.mxu0 0
    %983 = vmatpush1.bf16.msra.mxu0 0
    %984 = vmatprep.subr.bf16.mxu0 0
    %985 = vmatpush1.bf16.msra.mxu0 0
    %986 = vmatprep.mubr.bf16.mxu0 0
    %987 = vmatmul.mubr.bf16.gmra.mrb[0].mxu0 %v952
    %v988 = vpop.f32.mrb[0].mxu0
    %v989 = vadd.f32 0.0, %v988
    %v990 = vpop.f32.mrb[0].mxu0
    %v991 = vpop.f32.mrb[0].mxu0
    %v992 = vpop.f32.mrb[0].mxu0
    %993 = vdwg.mxu0
    %v994 = vadd.f32 %v430, %v989
    %v995 = vmul.f32 %v994, %v88
    %v996 = vtanh.pop %v995
    %v997 = vmul.f32 %v996, %v88
    %v998 = vadd.f32 %v997, %v95
    %v999 = vmul.f32 %v998, %v940
    %1001 = vrot.lane.b32.xlu0 %v998, 64
    %v1002 = vpop.permute.xlu0 %1001
    %v1004 = vmul.f32 %v998, %v1002
    %1006 = vrot.lane.b32.xlu0 %v1004, 32
    %v1007 = vpop.permute.xlu0 %1006
    %v1009 = vadd.f32 %v999, %v1007
    %v1010 = vtanh.pop %v1009
    %1012 = vrot.lane.b32.xlu0 %v1010, 64
    %v1013 = vpop.permute.xlu0 %1012
    %v1015 = vmul.f32 %v998, %v1013
    %v1016 = vpack.c.bf16 %v1015, %v1015
    %1018 = vrot.lane.b32.xlu0 %v1016, 32
    %v1019 = vpop.permute.xlu0 %1018
    %v1021 = vsel %vm138, %v1019, 0
    %1023 = vmatprep.subr.bf16.mxu0 0
    %1024 = vmatpush1.bf16.msra.mxu0 %v809
    %1025 = vmatprep.subr.bf16.mxu0 0
    %1026 = vmatpush1.bf16.msra.mxu0 %v810
    %1027 = vmatprep.subr.bf16.mxu0 0
    %1028 = vmatpush1.bf16.msra.mxu0 0
    %1029 = vmatprep.subr.bf16.mxu0 0
    %1030 = vmatpush1.bf16.msra.mxu0 0
    %1031 = vmatprep.subr.bf16.mxu0 0
    %1032 = vmatpush1.bf16.msra.mxu0 0
    %1033 = vmatprep.subr.bf16.mxu0 0
    %1034 = vmatpush1.bf16.msra.mxu0 0
    %1035 = vmatprep.subr.bf16.mxu0 0
    %1036 = vmatpush1.bf16.msra.mxu0 0
    %1037 = vmatprep.subr.bf16.mxu0 0
    %1038 = vmatpush1.bf16.msra.mxu0 0
    %1039 = vmatprep.subr.bf16.mxu0 0
    %1040 = vmatpush1.bf16.msra.mxu0 0
    %1041 = vmatprep.subr.bf16.mxu0 0
    %1042 = vmatpush1.bf16.msra.mxu0 0
    %1043 = vmatprep.subr.bf16.mxu0 0
    %1044 = vmatpush1.bf16.msra.mxu0 0
    %1045 = vmatprep.subr.bf16.mxu0 0
    %1046 = vmatpush1.bf16.msra.mxu0 0
    %1047 = vmatprep.subr.bf16.mxu0 0
    %1048 = vmatpush1.bf16.msra.mxu0 0
    %1049 = vmatprep.subr.bf16.mxu0 0
    %1050 = vmatpush1.bf16.msra.mxu0 0
    %1051 = vmatprep.subr.bf16.mxu0 0
    %1052 = vmatpush1.bf16.msra.mxu0 0
    %1053 = vmatprep.subr.bf16.mxu0 0
    %1054 = vmatpush1.bf16.msra.mxu0 0
    %1055 = vmatprep.mubr.bf16.mxu0 0
    %1056 = vmatmul.mubr.bf16.gmra.mrb[0].mxu0 %v1021
    %v1057 = vpop.f32.mrb[0].mxu0
    %v1058 = vadd.f32 0.0, %v1057
    %v1059 = vpop.f32.mrb[0].mxu0
    %v1060 = vpop.f32.mrb[0].mxu0
    %v1061 = vpop.f32.mrb[0].mxu0
    %1062 = vdwg.mxu0
    %v1063 = vadd.f32 %v511, %v1058
    %v1064 = vmul.f32 %v1063, %v88
    %v1065 = vtanh.pop %v1064
    %v1066 = vmul.f32 %v1065, %v88
    %v1067 = vadd.f32 %v1066, %v95
    %v1068 = vmul.f32 %v1067, %v1009
    %1070 = vrot.lane.b32.xlu0 %v1067, 64
    %v1071 = vpop.permute.xlu0 %1070
    %v1073 = vmul.f32 %v1067, %v1071
    %1075 = vrot.lane.b32.xlu0 %v1073, 32
    %v1076 = vpop.permute.xlu0 %1075
    %v1078 = vadd.f32 %v1068, %v1076
    %v1079 = vtanh.pop %v1078
    %1081 = vrot.lane.b32.xlu0 %v1079, 64
    %v1082 = vpop.permute.xlu0 %1081
    %v1084 = vmul.f32 %v1067, %v1082
    %v1085 = vpack.c.bf16 %v1084, %v1084
    %1087 = vrot.lane.b32.xlu0 %v1085, 32
    %v1088 = vpop.permute.xlu0 %1087
    %v1090 = vsel %vm138, %v1088, 0
    %1092 = vmatprep.subr.bf16.mxu0 0
    %1093 = vmatpush1.bf16.msra.mxu0 %v809
    %1094 = vmatprep.subr.bf16.mxu0 0
    %1095 = vmatpush1.bf16.msra.mxu0 %v810
    %1096 = vmatprep.subr.bf16.mxu0 0
    %1097 = vmatpush1.bf16.msra.mxu0 0
    %1098 = vmatprep.subr.bf16.mxu0 0
    %1099 = vmatpush1.bf16.msra.mxu0 0
    %1100 = vmatprep.subr.bf16.mxu0 0
    %1101 = vmatpush1.bf16.msra.mxu0 0
    %1102 = vmatprep.subr.bf16.mxu0 0
    %1103 = vmatpush1.bf16.msra.mxu0 0
    %1104 = vmatprep.subr.bf16.mxu0 0
    %1105 = vmatpush1.bf16.msra.mxu0 0
    %1106 = vmatprep.subr.bf16.mxu0 0
    %1107 = vmatpush1.bf16.msra.mxu0 0
    %1108 = vmatprep.subr.bf16.mxu0 0
    %1109 = vmatpush1.bf16.msra.mxu0 0
    %1110 = vmatprep.subr.bf16.mxu0 0
    %1111 = vmatpush1.bf16.msra.mxu0 0
    %1112 = vmatprep.subr.bf16.mxu0 0
    %1113 = vmatpush1.bf16.msra.mxu0 0
    %1114 = vmatprep.subr.bf16.mxu0 0
    %1115 = vmatpush1.bf16.msra.mxu0 0
    %1116 = vmatprep.subr.bf16.mxu0 0
    %1117 = vmatpush1.bf16.msra.mxu0 0
    %1118 = vmatprep.subr.bf16.mxu0 0
    %1119 = vmatpush1.bf16.msra.mxu0 0
    %1120 = vmatprep.subr.bf16.mxu0 0
    %1121 = vmatpush1.bf16.msra.mxu0 0
    %1122 = vmatprep.subr.bf16.mxu0 0
    %1123 = vmatpush1.bf16.msra.mxu0 0
    %1124 = vmatprep.mubr.bf16.mxu0 0
    %1125 = vmatmul.mubr.bf16.gmra.mrb[0].mxu0 %v1090
    %v1126 = vpop.f32.mrb[0].mxu0
    %v1127 = vadd.f32 0.0, %v1126
    %v1128 = vpop.f32.mrb[0].mxu0
    %v1129 = vpop.f32.mrb[0].mxu0
    %v1130 = vpop.f32.mrb[0].mxu0
    %1131 = vdwg.mxu0
    %v1132 = vadd.f32 %v592, %v1127
    %v1133 = vmul.f32 %v1132, %v88
    %v1134 = vtanh.pop %v1133
    %v1135 = vmul.f32 %v1134, %v88
    %v1136 = vadd.f32 %v1135, %v95
    %v1137 = vmul.f32 %v1136, %v1078
    %1139 = vrot.lane.b32.xlu0 %v1136, 64
    %v1140 = vpop.permute.xlu0 %1139
    %v1142 = vmul.f32 %v1136, %v1140
    %1144 = vrot.lane.b32.xlu0 %v1142, 32
    %v1145 = vpop.permute.xlu0 %1144
    %v1147 = vadd.f32 %v1137, %v1145
    %v1148 = vtanh.pop %v1147
    %1150 = vrot.lane.b32.xlu0 %v1148, 64
    %v1151 = vpop.permute.xlu0 %1150
    %v1153 = vmul.f32 %v1136, %v1151
    %v1154 = vpack.c.bf16 %v1153, %v1153
    %1156 = vrot.lane.b32.xlu0 %v1154, 32
    %v1157 = vpop.permute.xlu0 %1156
    %v1159 = vsel %vm138, %v1157, 0
    %1161 = vmatprep.subr.bf16.mxu0 0
    %1162 = vmatpush1.bf16.msra.mxu0 %v809
    %1163 = vmatprep.subr.bf16.mxu0 0
    %1164 = vmatpush1.bf16.msra.mxu0 %v810
    %1165 = vmatprep.subr.bf16.mxu0 0
    %1166 = vmatpush1.bf16.msra.mxu0 0
    %1167 = vmatprep.subr.bf16.mxu0 0
    %1168 = vmatpush1.bf16.msra.mxu0 0
    %1169 = vmatprep.subr.bf16.mxu0 0
    %1170 = vmatpush1.bf16.msra.mxu0 0
    %1171 = vmatprep.subr.bf16.mxu0 0
    %1172 = vmatpush1.bf16.msra.mxu0 0
    %1173 = vmatprep.subr.bf16.mxu0 0
    %1174 = vmatpush1.bf16.msra.mxu0 0
    %1175 = vmatprep.subr.bf16.mxu0 0
    %1176 = vmatpush1.bf16.msra.mxu0 0
    %1177 = vmatprep.subr.bf16.mxu0 0
    %1178 = vmatpush1.bf16.msra.mxu0 0
    %1179 = vmatprep.subr.bf16.mxu0 0
    %1180 = vmatpush1.bf16.msra.mxu0 0
    %1181 = vmatprep.subr.bf16.mxu0 0
    %1182 = vmatpush1.bf16.msra.mxu0 0
    %1183 = vmatprep.subr.bf16.mxu0 0
    %1184 = vmatpush1.bf16.msra.mxu0 0
    %1185 = vmatprep.subr.bf16.mxu0 0
    %1186 = vmatpush1.bf16.msra.mxu0 0
    %1187 = vmatprep.subr.bf16.mxu0 0
    %1188 = vmatpush1.bf16.msra.mxu0 0
    %1189 = vmatprep.subr.bf16.mxu0 0
    %1190 = vmatpush1.bf16.msra.mxu0 0
    %1191 = vmatprep.subr.bf16.mxu0 0
    %1192 = vmatpush1.bf16.msra.mxu0 0
    %1193 = vmatprep.mubr.bf16.mxu0 0
    %1194 = vmatmul.mubr.bf16.gmra.mrb[0].mxu0 %v1159
    %v1195 = vpop.f32.mrb[0].mxu0
    %v1196 = vadd.f32 0.0, %v1195
    %v1197 = vpop.f32.mrb[0].mxu0
    %v1198 = vpop.f32.mrb[0].mxu0
    %v1199 = vpop.f32.mrb[0].mxu0
    %1200 = vdwg.mxu0
    %v1201 = vadd.f32 %v673, %v1196
    %v1202 = vmul.f32 %v1201, %v88
    %v1203 = vtanh.pop %v1202
    %v1204 = vmul.f32 %v1203, %v88
    %v1205 = vadd.f32 %v1204, %v95
    %v1206 = vmul.f32 %v1205, %v1147
    %1208 = vrot.lane.b32.xlu0 %v1205, 64
    %v1209 = vpop.permute.xlu0 %1208
    %v1211 = vmul.f32 %v1205, %v1209
    %1213 = vrot.lane.b32.xlu0 %v1211, 32
    %v1214 = vpop.permute.xlu0 %1213
    %v1216 = vadd.f32 %v1206, %v1214
    %v1217 = vtanh.pop %v1216
    %1219 = vrot.lane.b32.xlu0 %v1217, 64
    %v1220 = vpop.permute.xlu0 %1219
    %v1222 = vmul.f32 %v1205, %v1220
    %v1223 = vpack.c.bf16 %v1222, %v1222
    %1225 = vrot.lane.b32.xlu0 %v1223, 32
    %v1226 = vpop.permute.xlu0 %1225
    %v1228 = vsel %vm138, %v1226, 0
    %1230 = vmatprep.subr.bf16.mxu0 0
    %1231 = vmatpush1.bf16.msra.mxu0 %v809
    %1232 = vmatprep.subr.bf16.mxu0 0
    %1233 = vmatpush1.bf16.msra.mxu0 %v810
    %1234 = vmatprep.subr.bf16.mxu0 0
    %1235 = vmatpush1.bf16.msra.mxu0 0
    %1236 = vmatprep.subr.bf16.mxu0 0
    %1237 = vmatpush1.bf16.msra.mxu0 0
    %1238 = vmatprep.subr.bf16.mxu0 0
    %1239 = vmatpush1.bf16.msra.mxu0 0
    %1240 = vmatprep.subr.bf16.mxu0 0
    %1241 = vmatpush1.bf16.msra.mxu0 0
    %1242 = vmatprep.subr.bf16.mxu0 0
    %1243 = vmatpush1.bf16.msra.mxu0 0
    %1244 = vmatprep.subr.bf16.mxu0 0
    %1245 = vmatpush1.bf16.msra.mxu0 0
    %1246 = vmatprep.subr.bf16.mxu0 0
    %1247 = vmatpush1.bf16.msra.mxu0 0
    %1248 = vmatprep.subr.bf16.mxu0 0
    %1249 = vmatpush1.bf16.msra.mxu0 0
    %1250 = vmatprep.subr.bf16.mxu0 0
    %1251 = vmatpush1.bf16.msra.mxu0 0
    %1252 = vmatprep.subr.bf16.mxu0 0
    %1253 = vmatpush1.bf16.msra.mxu0 0
    %1254 = vmatprep.subr.bf16.mxu0 0
    %1255 = vmatpush1.bf16.msra.mxu0 0
    %1256 = vmatprep.subr.bf16.mxu0 0
    %1257 = vmatpush1.bf16.msra.mxu0 0
    %1258 = vmatprep.subr.bf16.mxu0 0
    %1259 = vmatpush1.bf16.msra.mxu0 0
    %1260 = vmatprep.subr.bf16.mxu0 0
    %1261 = vmatpush1.bf16.msra.mxu0 0
    %1262 = vmatprep.mubr.bf16.mxu0 0
    %1263 = vmatmul.mubr.bf16.gmra.mrb[0].mxu0 %v1228
    %v1264 = vpop.f32.mrb[0].mxu0
    %v1265 = vadd.f32 0.0, %v1264
    %v1266 = vpop.f32.mrb[0].mxu0
    %v1267 = vpop.f32.mrb[0].mxu0
    %v1268 = vpop.f32.mrb[0].mxu0
    %1269 = vdwg.mxu0
    %v1270 = vadd.f32 %v774, %v1265
    %v1271 = vmul.f32 %v1270, %v88
    %v1272 = vtanh.pop %v1271
    %v1273 = vmul.f32 %v1272, %v88
    %v1274 = vadd.f32 %v1273, %v95
    %v1275 = vmul.f32 %v1274, %v1216
    %1277 = vrot.lane.b32.xlu0 %v1274, 64
    %v1278 = vpop.permute.xlu0 %1277
    %v1280 = vmul.f32 %v1274, %v1278
    %1282 = vrot.lane.b32.xlu0 %v1280, 32
    %v1283 = vpop.permute.xlu0 %1282
    %v1285 = vadd.f32 %v1275, %v1283
    %v1286 = vtanh.pop %v1285
    %1288 = vrot.lane.b32.xlu0 %v1286, 64
    %v1289 = vpop.permute.xlu0 %1288
    %v1291 = vmul.f32 %v1274, %v1289
    %v1292 = vld [vmem:[#allocation7 + $0x10] sm:$0xff]
    %v1293 = vld [vmem:[#allocation7 + $0x18] sm:$0xff]
    %v1294 = vld [vmem:[#allocation7 + $0x20] sm:$0xff]
    %v1295 = vld [vmem:[#allocation7 + $0x28] sm:$0xff]
    %v1296 = vld [vmem:[#allocation7 + $0xd] sm:$0x1]
    %v1297 = vlaneseq
    %v1298 = vshrl.u32 %v1297, 7
    %v1299 = vsub.s32 0, %v1298
    %v1300 = vrot.slane %v1296, %v1299
    %1302 = vrot.lane.b32.xlu0 %v1291, 32
    %v1303 = vpop.permute.xlu0 %1302
    %v1304 = vsel %vm138, %v1303, 0
    %1306 = vmatprep.subr.mxu0 0.0
    %1307 = vmatpush1.msra.mxu0 %v1292
    %1308 = vmatprep.subr.mxu0 0.0
    %1309 = vmatpush1.msra.mxu0 %v1293
    %1310 = vmatprep.subr.mxu0 0.0
    %1311 = vmatpush1.msra.mxu0 %v1294
    %1312 = vmatprep.subr.mxu0 0.0
    %1313 = vmatpush1.msra.mxu0 %v1295
    %1314 = vmatprep.subr.mxu0 0.0
    %1315 = vmatpush1.msra.mxu0 0.0
    %1316 = vmatprep.subr.mxu0 0.0
    %1317 = vmatpush1.msra.mxu0 0.0
    %1318 = vmatprep.subr.mxu0 0.0
    %1319 = vmatpush1.msra.mxu0 0.0
    %1320 = vmatprep.subr.mxu0 0.0
    %1321 = vmatpush1.msra.mxu0 0.0
    %1322 = vmatprep.subr.mxu0 0.0
    %1323 = vmatpush1.msra.mxu0 0.0
    %1324 = vmatprep.subr.mxu0 0.0
    %1325 = vmatpush1.msra.mxu0 0.0
    %1326 = vmatprep.subr.mxu0 0.0
    %1327 = vmatpush1.msra.mxu0 0.0
    %1328 = vmatprep.subr.mxu0 0.0
    %1329 = vmatpush1.msra.mxu0 0.0
    %1330 = vmatprep.subr.mxu0 0.0
    %1331 = vmatpush1.msra.mxu0 0.0
    %1332 = vmatprep.subr.mxu0 0.0
    %1333 = vmatpush1.msra.mxu0 0.0
    %1334 = vmatprep.subr.mxu0 0.0
    %1335 = vmatpush1.msra.mxu0 0.0
    %1336 = vmatprep.subr.mxu0 0.0
    %1337 = vmatpush1.msra.mxu0 0.0
    %1338 = vmatprep.subr.mxu0 0.0
    %1339 = vmatpush1.msra.mxu0 0.0
    %1340 = vmatprep.subr.mxu0 0.0
    %1341 = vmatpush1.msra.mxu0 0.0
    %1342 = vmatprep.subr.mxu0 0.0
    %1343 = vmatpush1.msra.mxu0 0.0
    %1344 = vmatprep.subr.mxu0 0.0
    %1345 = vmatpush1.msra.mxu0 0.0
    %1346 = vmatprep.subr.mxu0 0.0
    %1347 = vmatpush1.msra.mxu0 0.0
    %1348 = vmatprep.subr.mxu0 0.0
    %1349 = vmatpush1.msra.mxu0 0.0
    %1350 = vmatprep.subr.mxu0 0.0
    %1351 = vmatpush1.msra.mxu0 0.0
    %1352 = vmatprep.subr.mxu0 0.0
    %1353 = vmatpush1.msra.mxu0 0.0
    %1354 = vmatprep.subr.mxu0 0.0
    %1355 = vmatpush1.msra.mxu0 0.0
    %1356 = vmatprep.subr.mxu0 0.0
    %1357 = vmatpush1.msra.mxu0 0.0
    %1358 = vmatprep.subr.mxu0 0.0
    %1359 = vmatpush1.msra.mxu0 0.0
    %1360 = vmatprep.subr.mxu0 0.0
    %1361 = vmatpush1.msra.mxu0 0.0
    %1362 = vmatprep.subr.mxu0 0.0
    %1363 = vmatpush1.msra.mxu0 0.0
    %1364 = vmatprep.subr.mxu0 0.0
    %1365 = vmatpush1.msra.mxu0 0.0
    %1366 = vmatprep.subr.mxu0 0.0
    %1367 = vmatpush1.msra.mxu0 0.0
    %1368 = vmatprep.subr.mxu0 0.0
    %1369 = vmatpush1.msra.mxu0 0.0
    %1370 = vmatprep.mubr.f32.mxu0 0.0
    %1371 = vmatmul.mubr.f32.gmra.mrb[0].mxu0 %v1304
    %v1372 = vpop.f32.mrb[0].mxu0
    %v1373 = vadd.f32 %v1300, %v1372
    %v1374 = vpop.f32.mrb[0].mxu0
    %1375 = vdwg.mxu0
    %vm1376 = vcmask 91136
    %v1377 = vsel %vm1376, %v1373, -inf
    %1378 = vmax.xlane.f32.xlu0 %v1377
    %v1379 = vpop.xlane.xlu0 %1378
    %v1380 = vsub.f32 %v1373, %v1379
    %v1381 = vmul.f32 %v1380, 1.442695
    %v1382 = vpow.pop %v1381
    %v1383 = vsel %vm1376, %v1382, 0.0
    %1384 = vadd.xlane.f32.xlu0 %v1383
    %v1385 = vpop.xlane.xlu0 %1384
    %v1386 = vrcp.pop %v1385
    %v1387 = vmul.f32 %v1382, %v1386
    %1388 = vst.msk [vmem:[#allocation9] sm:$0x3] %vm1376, %v1387
    // Predicated region
    $region26: #{my_model_next_act.1} parent=1 // pred_check
      _
    $region27: #{my_model_next_act.1} parent=1 // pred_check_branch
      %1390 = sbr.rel (0) target = $region29
    $region28: #{my_model_next_act.1} parent=1 // pred_region
      %s1392 = ssub.s32 32, 32
      %1393 = vsyncadd [#allocation4], %s1392
      %s1395 = sshll.u32 [#allocation9], 4
      %s1396 = int_to_ptr.vmem [resolvable:$true] %s1395
      %1398 = dma.vmem_to_hbm [thread:$0]  %s1396, 32, %s3, [#allocation4]
    $region29: #{my_model_next_act.1} parent=1 // pred_fallthru
      _
    // Predicated region
    $region30: #{my_model_next_act.1} parent=1 // pred_check
      _
    $region31: #{my_model_next_act.1} parent=1 // pred_check_branch
      %1400 = sbr.rel (0) target = $region33
    $region32: #{my_model_next_act.1} parent=1 // pred_region
      %1401 = dma.done [#allocation4], 32
    $region33: #{my_model_next_act.1} parent=1 // pred_fallthru
      _
    %1402 = vsyncpa [#allocation3], 1
    %1403 = vsyncpa [#allocation8], 1
    %1404 = vsyncpa [#allocation4], 1
    %1405 = vsyncpa [#allocation5], 1

</llo_original>
